<compile_context>
chip_gen: v6e
topology: v6e:2x2x1
jax: 0.10.0
libtpu: 0.0.40
codegen_flags: <defaults>
</compile_context>

<pallas_src>
import jax
import jax.numpy as jnp
import numpy as np
from jax import lax
from jax.experimental import pallas as pl
from jax.experimental.pallas import tpu as pltpu

EMB = 128   # embedding dim
HID = 64    # LSTM hidden dim
FF = 32     # ff1 width


def lstm_head_kernel(gx_ref, h0_ref, c0_ref,
                     w_hh_ref, w1_ref, b1_ref, w2_ref, b2_ref,
                     p_ref, hn_ref, cn_ref):
    """One (batch_tile, time_chunk) grid step of the LSTM recurrence + FF head.

    gx_ref : (TCHUNK, BTILE, 4*HID)  precomputed gate pre-activations x@W_ih + b, gate order [i,f,o,g]
    h0/c0  : (BTILE, HID)            initial hidden / cell state
    w_hh   : (HID, 4*HID)            hidden->gates weights
    w1,b1  : (HID, FF), (1, FF)      ff1 linear
    w2,b2  : (FF, C),  (1, C)        ff2 linear
    outputs: p (BTILE, C) log-probs of the last step, hn/cn (BTILE, HID) final LSTM state.
             hn/cn also serve as the recurrence carry: their block index is constant along the
             time grid axis, so they stay resident in VMEM across time chunks.
    """
    t_blk = pl.program_id(1)
    H = HID
    tchunk = gx_ref.shape[0]

    @pl.when(t_blk == 0)
    def _init():
        hn_ref[...] = h0_ref[...]
        cn_ref[...] = c0_ref[...]

    def step(t, carry):
        h = hn_ref[...]
        c = cn_ref[...]
        # Only the recurrent matmul (BTILE,64)@(64,256) is on the serial critical path.
        gates = gx_ref[t] + jnp.dot(h, w_hh_ref[...],
                                    preferred_element_type=jnp.float32)
        sig = 1.0 / (1.0 + jnp.exp(-gates[:, :3 * H]))   # [i, f, o] in one 192-lane slab
        i = sig[:, 0 * H:1 * H]
        f = sig[:, 1 * H:2 * H]
        o = sig[:, 2 * H:3 * H]
        g = jnp.tanh(gates[:, 3 * H:4 * H])
        c_new = f * c + i * g
        h_new = o * jnp.tanh(c_new)
        hn_ref[...] = h_new
        cn_ref[...] = c_new
        return carry

    lax.fori_loop(0, tchunk, step, 0, unroll=True)

    @pl.when(t_blk == pl.num_programs(1) - 1)
    def _finalize():
        h_last = hn_ref[...]
        # ff1: Dropout (identity at inference) -> Linear(64,32) -> ReLU
        h2 = jnp.maximum(
            jnp.dot(h_last, w1_ref[...], preferred_element_type=jnp.float32)
            + b1_ref[...], 0.0)
        # ff2: Dropout (identity at inference) -> Linear(32, num_class)
        h3 = jnp.dot(h2, w2_ref[...], preferred_element_type=jnp.float32) + b2_ref[...]
        # log_softmax over the class dim (== F.log_softmax(h3[:, -1], dim=1))
        m = jnp.max(h3, axis=1, keepdims=True)
        s = h3 - m
        lse = jnp.log(jnp.sum(jnp.exp(s), axis=1, keepdims=True))
        p_ref[...] = s - lse


def init_params(key, num_vocab, num_class):
    """Random parameters. Internal gate order along the 4H axis is [i, f, o, g]."""
    ks = jax.random.split(key, 10)

    def uni(k, shape, bound):
        return jax.random.uniform(k, shape, jnp.float32, -bound, bound)

    emb = jax.random.normal(ks[0], (num_vocab, EMB), jnp.float32)
    emb = emb.at[0].set(0.0)                       # padding_idx=0 row is zeros

    kb = 1.0 / (HID ** 0.5)
    w_ih = uni(ks[1], (EMB, 4 * HID), kb)
    w_hh = uni(ks[2], (HID, 4 * HID), kb)
    b = uni(ks[3], (1, 4 * HID), kb) + uni(ks[4], (1, 4 * HID), kb)   # b_ih + b_hh

    kb1 = 1.0 / (HID ** 0.5)
    w1 = uni(ks[5], (HID, FF), kb1)
    b1 = uni(ks[6], (1, FF), kb1)

    kb2 = 1.0 / (FF ** 0.5)
    w2 = uni(ks[7], (FF, num_class), kb2)
    b2 = uni(ks[8], (1, num_class), kb2)

    return dict(emb=emb, w_ih=w_ih, w_hh=w_hh, b=b, w1=w1, b1=b1, w2=w2, b2=b2)


def _round_up(x, m):
    return (x + m - 1) // m * m


def _pick_tchunk(T, cap=32):
    """Largest divisor of T that is <= cap (time-chunk size for streaming)."""
    for c in range(min(T, cap), 0, -1):
        if T % c == 0:
            return c
    return 1


def lstm_forward(params, x_tokens, hidden):
    """Mirrors LSTM.forward(x, hidden) -> (log_probs, (h_n, c_n))."""
    h0, c0 = hidden                                  # (1, B, HID) each
    B, T = x_tokens.shape
    num_class = params["w2"].shape[1]

    # Embedding + input projection + bias are all linear: fold them into one small (vocab, 4H)
    # table and gather that, instead of gathering 128-wide embeddings and re-projecting per step.
    emb_proj = (jnp.dot(params["emb"], params["w_ih"],
                        preferred_element_type=jnp.float32)
                + params["b"])                                       # (V, 4H)
    gates_x = jnp.take(emb_proj, x_tokens, axis=0)                   # (B, T, 4H)
    gates_x = jnp.transpose(gates_x, (1, 0, 2)).astype(jnp.float32)  # (T, B, 4H)

    # Pad the batch to a sublane-aligned tile; padded rows are sliced off after the call.
    Bp = _round_up(max(B, 1), 8)
    btile = min(Bp, 128)
    Bp = _round_up(Bp, btile)
    tchunk = _pick_tchunk(T)

    def pad_b(a, axis):
        pad = Bp - a.shape[axis]
        if pad == 0:
            return a
        widths = [(0, 0)] * a.ndim
        widths[axis] = (0, pad)
        return jnp.pad(a, widths)

    gates_x = pad_b(gates_x, 1)
    h0p = pad_b(h0[0].astype(jnp.float32), 0)
    c0p = pad_b(c0[0].astype(jnp.float32), 0)

    grid = (Bp // btile, T // tchunk)   # (parallel batch tiles, streamed time chunks)

    p, hn, cn = pl.pallas_call(
        lstm_head_kernel,
        out_shape=(jax.ShapeDtypeStruct((Bp, num_class), jnp.float32),
                   jax.ShapeDtypeStruct((Bp, HID), jnp.float32),
                   jax.ShapeDtypeStruct((Bp, HID), jnp.float32)),
        grid=grid,
        in_specs=[
            pl.BlockSpec((tchunk, btile, 4 * HID), lambda b, t: (t, b, 0)),  # gates_x chunk
            pl.BlockSpec((btile, HID), lambda b, t: (b, 0)),                 # h0
            pl.BlockSpec((btile, HID), lambda b, t: (b, 0)),                 # c0
            pl.BlockSpec((HID, 4 * HID), lambda b, t: (0, 0)),               # w_hh
            pl.BlockSpec((HID, FF), lambda b, t: (0, 0)),                    # w1
            pl.BlockSpec((1, FF), lambda b, t: (0, 0)),                      # b1
            pl.BlockSpec((FF, num_class), lambda b, t: (0, 0)),              # w2
            pl.BlockSpec((1, num_class), lambda b, t: (0, 0)),               # b2
        ],
        out_specs=(
            pl.BlockSpec((btile, num_class), lambda b, t: (b, 0)),           # p
            pl.BlockSpec((btile, HID), lambda b, t: (b, 0)),                 # h_n
            pl.BlockSpec((btile, HID), lambda b, t: (b, 0)),                 # c_n
        ),
        compiler_params=pltpu.CompilerParams(
            dimension_semantics=("parallel", "arbitrary")),
    )(gates_x, h0p, c0p,
      params["w_hh"], params["w1"], params["b1"], params["w2"], params["b2"])

    p = p[:B]
    hn = hn[:B]
    cn = cn[:B]
    return p, (hn[None, :, :], cn[None, :, :])


def reference_forward(params, x_tokens, hidden):
    """Pure-JAX reference (identical math, same [i,f,o,g] gate layout) used to validate the kernel."""
    h = hidden[0][0]
    c = hidden[1][0]
    x_emb = jnp.take(params["emb"], x_tokens, axis=0)        # (B, T, EMB)
    T = x_emb.shape[1]
    H = HID
    for t in range(T):
        g = (x_emb[:, t, :] @ params["w_ih"] + h @ params["w_hh"] + params["b"])
        i = jax.nn.sigmoid(g[:, 0 * H:1 * H])
        f = jax.nn.sigmoid(g[:, 1 * H:2 * H])
        o = jax.nn.sigmoid(g[:, 2 * H:3 * H])
        gg = jnp.tanh(g[:, 3 * H:4 * H])
        c = f * c + i * gg
        h = o * jnp.tanh(c)
    h2 = jnp.maximum(h @ params["w1"] + params["b1"], 0.0)
    h3 = h2 @ params["w2"] + params["b2"]
    p = jax.nn.log_softmax(h3, axis=1)
    return p, (h[None], c[None])


if __name__ == "__main__":
    # TODO(synk): nn.Dropout is a no-op at inference; training-mode dropout masks not implemented.
    num_vocab, num_class = 50, 5
    B, T = 2, 8

    key = jax.random.PRNGKey(0)
    k_params, k_tok = jax.random.split(key)
    params = init_params(k_params, num_vocab, num_class)

    x_tokens = jax.random.randint(k_tok, (B, T), 0, num_vocab, dtype=jnp.int32)
    hidden = (jnp.zeros((1, B, HID), jnp.float32), jnp.zeros((1, B, HID), jnp.float32))

    fwd = jax.jit(lstm_forward)
    p, (hn, cn) = fwd(params, x_tokens, hidden)
    jax.block_until_ready((p, hn, cn))

    p_ref, (hn_ref, cn_ref) = reference_forward(params, x_tokens, hidden)
    np.testing.assert_allclose(np.asarray(p), np.asarray(p_ref), atol=2e-3, rtol=2e-3)
    np.testing.assert_allclose(np.asarray(hn), np.asarray(hn_ref), atol=2e-3, rtol=2e-3)
    np.testing.assert_allclose(np.asarray(cn), np.asarray(cn_ref), atol=2e-3, rtol=2e-3)

    print("KERNEL_OK")
</pallas_src>

<mosaic_0001>
module attributes {stable_mosaic.version = 11 : i64} {
  func.func @lstm_head_kernel(%arg0: i32, %arg1: i32, %arg2: memref<8x8x256xf32, #tpu.memory_space<vmem>>, %arg3: memref<8x64xf32, #tpu.memory_space<vmem>>, %arg4: memref<8x64xf32, #tpu.memory_space<vmem>>, %arg5: memref<64x256xf32, #tpu.memory_space<vmem>>, %arg6: memref<64x32xf32, #tpu.memory_space<vmem>>, %arg7: memref<1x32xf32, #tpu.memory_space<vmem>>, %arg8: memref<32x5xf32, #tpu.memory_space<vmem>>, %arg9: memref<1x5xf32, #tpu.memory_space<vmem>>, %arg10: memref<8x5xf32, #tpu.memory_space<vmem>>, %arg11: memref<8x64xf32, #tpu.memory_space<vmem>>, %arg12: memref<8x64xf32, #tpu.memory_space<vmem>>) attributes {dimension_semantics = [#tpu.dimension_semantics<parallel>, #tpu.dimension_semantics<arbitrary>], iteration_bounds = array<i64: 1, 1>, scalar_prefetch = 0 : i64, scratch_operands = 0 : i64, tpu.core_type = #tpu.core_type<tc>, window_params = [{transform_indices = @transform_0, window_bounds = array<i64: 8, 8, 256>}, {transform_indices = @transform_1, window_bounds = array<i64: 8, 64>}, {transform_indices = @transform_2, window_bounds = array<i64: 8, 64>}, {pipeline_mode = #tpu.pipeline_mode<synchronous>, transform_indices = @transform_3, window_bounds = array<i64: 64, 256>}, {pipeline_mode = #tpu.pipeline_mode<synchronous>, transform_indices = @transform_4, window_bounds = array<i64: 64, 32>}, {pipeline_mode = #tpu.pipeline_mode<synchronous>, transform_indices = @transform_5, window_bounds = array<i64: 1, 32>}, {pipeline_mode = #tpu.pipeline_mode<synchronous>, transform_indices = @transform_6, window_bounds = array<i64: 32, 5>}, {pipeline_mode = #tpu.pipeline_mode<synchronous>, transform_indices = @transform_7, window_bounds = array<i64: 1, 5>}, {transform_indices = @transform_8, window_bounds = array<i64: 8, 5>}, {transform_indices = @transform_9, window_bounds = array<i64: 8, 64>}, {transform_indices = @transform_10, window_bounds = array<i64: 8, 64>}]} {
    %c0_i32 = arith.constant 0 : i32
    %0 = arith.cmpi eq, %arg1, %c0_i32 : i32
    %1 = arith.extui %0 : i1 to i32
    %c0_i32_0 = arith.constant 0 : i32
    %2 = arith.cmpi ne, %1, %c0_i32_0 : i32
    scf.if %2 {
      %c0_130 = arith.constant 0 : index
      %c0_131 = arith.constant 0 : index
      %230 = vector.load %arg3[%c0_130, %c0_131] : memref<8x64xf32, #tpu.memory_space<vmem>>, vector<8x64xf32>
      %c0_132 = arith.constant 0 : index
      %c0_133 = arith.constant 0 : index
      %231 = vector.load %arg11[%c0_132, %c0_133] : memref<8x64xf32, #tpu.memory_space<vmem>>, vector<8x64xf32>
      tpu.vector_store %arg11[%c0_132, %c0_133], %230 {strides = array<i32>} : memref<8x64xf32, #tpu.memory_space<vmem>>, vector<8x64xf32>,
      %c0_134 = arith.constant 0 : index
      %c0_135 = arith.constant 0 : index
      %232 = vector.load %arg4[%c0_134, %c0_135] : memref<8x64xf32, #tpu.memory_space<vmem>>, vector<8x64xf32>
      %c0_136 = arith.constant 0 : index
      %c0_137 = arith.constant 0 : index
      %233 = vector.load %arg12[%c0_136, %c0_137] : memref<8x64xf32, #tpu.memory_space<vmem>>, vector<8x64xf32>
      tpu.vector_store %arg12[%c0_136, %c0_137], %232 {strides = array<i32>} : memref<8x64xf32, #tpu.memory_space<vmem>>, vector<8x64xf32>,
    } else {
    }
    %c0_i32_1 = arith.constant 0 : i32
    %c0 = arith.constant 0 : index
    %c0_2 = arith.constant 0 : index
    %3 = vector.load %arg11[%c0, %c0_2] : memref<8x64xf32, #tpu.memory_space<vmem>>, vector<8x64xf32>
    %c0_3 = arith.constant 0 : index
    %c0_4 = arith.constant 0 : index
    %4 = vector.load %arg12[%c0_3, %c0_4] : memref<8x64xf32, #tpu.memory_space<vmem>>, vector<8x64xf32>
    %5 = arith.index_cast %c0_i32_1 : i32 to index
    %c0_5 = arith.constant 0 : index
    %c0_6 = arith.constant 0 : index
    %6 = vector.load %arg2[%5, %c0_5, %c0_6] : memref<8x8x256xf32, #tpu.memory_space<vmem>>, vector<1x8x256xf32>
    %7 = vector.shape_cast %6 : vector<1x8x256xf32> to vector<8x256xf32>
    %c0_7 = arith.constant 0 : index
    %c0_8 = arith.constant 0 : index
    %8 = vector.load %arg5[%c0_7, %c0_8] : memref<64x256xf32, #tpu.memory_space<vmem>>, vector<64x256xf32>
    %cst = arith.constant dense<0.000000e+00> : vector<8x256xf32>
    %9 = tpu.matmul %3, %8, %cst {dimension_numbers = #tpu.dot_dimension_numbers<[1], [0], [0], [1], [0, 0, 1, 1], [], []>} : vector<8x64xf32>, vector<64x256xf32>, vector<8x256xf32> -> vector<8x256xf32>
    %10 = arith.addf %7, %9 : vector<8x256xf32>
    %11 = vector.extract_strided_slice %10 {offsets = [0, 0], sizes = [8, 192], strides = [1, 1]} : vector<8x256xf32> to vector<8x192xf32>
    %cst_9 = arith.constant 0.000000e+00 : f32
    %12 = vector.broadcast %cst_9 : f32 to vector<8x192xf32>
    %13 = arith.subf %12, %11 : vector<8x192xf32>
    %14 = math.exp %13 : vector<8x192xf32>
    %cst_10 = arith.constant 1.000000e+00 : f32
    %15 = vector.broadcast %cst_10 : f32 to vector<8x192xf32>
    %16 = arith.addf %15, %14 : vector<8x192xf32>
    %cst_11 = arith.constant 1.000000e+00 : f32
    %17 = vector.broadcast %cst_11 : f32 to vector<8x192xf32>
    %18 = arith.divf %17, %16 : vector<8x192xf32>
    %19 = vector.extract_strided_slice %18 {offsets = [0, 0], sizes = [8, 64], strides = [1, 1]} : vector<8x192xf32> to vector<8x64xf32>
    %20 = vector.extract_strided_slice %18 {offsets = [0, 64], sizes = [8, 64], strides = [1, 1]} : vector<8x192xf32> to vector<8x64xf32>
    %21 = vector.extract_strided_slice %18 {offsets = [0, 128], sizes = [8, 64], strides = [1, 1]} : vector<8x192xf32> to vector<8x64xf32>
    %22 = vector.extract_strided_slice %10 {offsets = [0, 192], sizes = [8, 64], strides = [1, 1]} : vector<8x256xf32> to vector<8x64xf32>
    %23 = math.tanh %22 : vector<8x64xf32>
    %24 = arith.mulf %20, %4 : vector<8x64xf32>
    %25 = arith.mulf %19, %23 : vector<8x64xf32>
    %26 = arith.addf %24, %25 : vector<8x64xf32>
    %27 = math.tanh %26 : vector<8x64xf32>
    %28 = arith.mulf %21, %27 : vector<8x64xf32>
    %c0_12 = arith.constant 0 : index
    %c0_13 = arith.constant 0 : index
    %29 = vector.load %arg11[%c0_12, %c0_13] : memref<8x64xf32, #tpu.memory_space<vmem>>, vector<8x64xf32>
    tpu.vector_store %arg11[%c0_12, %c0_13], %28 {strides = array<i32>} : memref<8x64xf32, #tpu.memory_space<vmem>>, vector<8x64xf32>,
    %c0_14 = arith.constant 0 : index
    %c0_15 = arith.constant 0 : index
    %30 = vector.load %arg12[%c0_14, %c0_15] : memref<8x64xf32, #tpu.memory_space<vmem>>, vector<8x64xf32>
    tpu.vector_store %arg12[%c0_14, %c0_15], %26 {strides = array<i32>} : memref<8x64xf32, #tpu.memory_space<vmem>>, vector<8x64xf32>,
    %c1_i32 = arith.constant 1 : i32
    %c0_16 = arith.constant 0 : index
    %c0_17 = arith.constant 0 : index
    %31 = vector.load %arg11[%c0_16, %c0_17] : memref<8x64xf32, #tpu.memory_space<vmem>>, vector<8x64xf32>
    %c0_18 = arith.constant 0 : index
    %c0_19 = arith.constant 0 : index
    %32 = vector.load %arg12[%c0_18, %c0_19] : memref<8x64xf32, #tpu.memory_space<vmem>>, vector<8x64xf32>
    %33 = arith.index_cast %c1_i32 : i32 to index
    %c0_20 = arith.constant 0 : index
    %c0_21 = arith.constant 0 : index
    %34 = vector.load %arg2[%33, %c0_20, %c0_21] : memref<8x8x256xf32, #tpu.memory_space<vmem>>, vector<1x8x256xf32>
    %35 = vector.shape_cast %34 : vector<1x8x256xf32> to vector<8x256xf32>
    %c0_22 = arith.constant 0 : index
    %c0_23 = arith.constant 0 : index
    %36 = vector.load %arg5[%c0_22, %c0_23] : memref<64x256xf32, #tpu.memory_space<vmem>>, vector<64x256xf32>
    %cst_24 = arith.constant dense<0.000000e+00> : vector<8x256xf32>
    %37 = tpu.matmul %31, %36, %cst_24 {dimension_numbers = #tpu.dot_dimension_numbers<[1], [0], [0], [1], [0, 0, 1, 1], [], []>} : vector<8x64xf32>, vector<64x256xf32>, vector<8x256xf32> -> vector<8x256xf32>
    %38 = arith.addf %35, %37 : vector<8x256xf32>
    %39 = vector.extract_strided_slice %38 {offsets = [0, 0], sizes = [8, 192], strides = [1, 1]} : vector<8x256xf32> to vector<8x192xf32>
    %cst_25 = arith.constant 0.000000e+00 : f32
    %40 = vector.broadcast %cst_25 : f32 to vector<8x192xf32>
    %41 = arith.subf %40, %39 : vector<8x192xf32>
    %42 = math.exp %41 : vector<8x192xf32>
    %cst_26 = arith.constant 1.000000e+00 : f32
    %43 = vector.broadcast %cst_26 : f32 to vector<8x192xf32>
    %44 = arith.addf %43, %42 : vector<8x192xf32>
    %cst_27 = arith.constant 1.000000e+00 : f32
    %45 = vector.broadcast %cst_27 : f32 to vector<8x192xf32>
    %46 = arith.divf %45, %44 : vector<8x192xf32>
    %47 = vector.extract_strided_slice %46 {offsets = [0, 0], sizes = [8, 64], strides = [1, 1]} : vector<8x192xf32> to vector<8x64xf32>
    %48 = vector.extract_strided_slice %46 {offsets = [0, 64], sizes = [8, 64], strides = [1, 1]} : vector<8x192xf32> to vector<8x64xf32>
    %49 = vector.extract_strided_slice %46 {offsets = [0, 128], sizes = [8, 64], strides = [1, 1]} : vector<8x192xf32> to vector<8x64xf32>
    %50 = vector.extract_strided_slice %38 {offsets = [0, 192], sizes = [8, 64], strides = [1, 1]} : vector<8x256xf32> to vector<8x64xf32>
    %51 = math.tanh %50 : vector<8x64xf32>
    %52 = arith.mulf %48, %32 : vector<8x64xf32>
    %53 = arith.mulf %47, %51 : vector<8x64xf32>
    %54 = arith.addf %52, %53 : vector<8x64xf32>
    %55 = math.tanh %54 : vector<8x64xf32>
    %56 = arith.mulf %49, %55 : vector<8x64xf32>
    %c0_28 = arith.constant 0 : index
    %c0_29 = arith.constant 0 : index
    %57 = vector.load %arg11[%c0_28, %c0_29] : memref<8x64xf32, #tpu.memory_space<vmem>>, vector<8x64xf32>
    tpu.vector_store %arg11[%c0_28, %c0_29], %56 {strides = array<i32>} : memref<8x64xf32, #tpu.memory_space<vmem>>, vector<8x64xf32>,
    %c0_30 = arith.constant 0 : index
    %c0_31 = arith.constant 0 : index
    %58 = vector.load %arg12[%c0_30, %c0_31] : memref<8x64xf32, #tpu.memory_space<vmem>>, vector<8x64xf32>
    tpu.vector_store %arg12[%c0_30, %c0_31], %54 {strides = array<i32>} : memref<8x64xf32, #tpu.memory_space<vmem>>, vector<8x64xf32>,
    %c2_i32 = arith.constant 2 : i32
    %c0_32 = arith.constant 0 : index
    %c0_33 = arith.constant 0 : index
    %59 = vector.load %arg11[%c0_32, %c0_33] : memref<8x64xf32, #tpu.memory_space<vmem>>, vector<8x64xf32>
    %c0_34 = arith.constant 0 : index
    %c0_35 = arith.constant 0 : index
    %60 = vector.load %arg12[%c0_34, %c0_35] : memref<8x64xf32, #tpu.memory_space<vmem>>, vector<8x64xf32>
    %61 = arith.index_cast %c2_i32 : i32 to index
    %c0_36 = arith.constant 0 : index
    %c0_37 = arith.constant 0 : index
    %62 = vector.load %arg2[%61, %c0_36, %c0_37] : memref<8x8x256xf32, #tpu.memory_space<vmem>>, vector<1x8x256xf32>
    %63 = vector.shape_cast %62 : vector<1x8x256xf32> to vector<8x256xf32>
    %c0_38 = arith.constant 0 : index
    %c0_39 = arith.constant 0 : index
    %64 = vector.load %arg5[%c0_38, %c0_39] : memref<64x256xf32, #tpu.memory_space<vmem>>, vector<64x256xf32>
    %cst_40 = arith.constant dense<0.000000e+00> : vector<8x256xf32>
    %65 = tpu.matmul %59, %64, %cst_40 {dimension_numbers = #tpu.dot_dimension_numbers<[1], [0], [0], [1], [0, 0, 1, 1], [], []>} : vector<8x64xf32>, vector<64x256xf32>, vector<8x256xf32> -> vector<8x256xf32>
    %66 = arith.addf %63, %65 : vector<8x256xf32>
    %67 = vector.extract_strided_slice %66 {offsets = [0, 0], sizes = [8, 192], strides = [1, 1]} : vector<8x256xf32> to vector<8x192xf32>
    %cst_41 = arith.constant 0.000000e+00 : f32
    %68 = vector.broadcast %cst_41 : f32 to vector<8x192xf32>
    %69 = arith.subf %68, %67 : vector<8x192xf32>
    %70 = math.exp %69 : vector<8x192xf32>
    %cst_42 = arith.constant 1.000000e+00 : f32
    %71 = vector.broadcast %cst_42 : f32 to vector<8x192xf32>
    %72 = arith.addf %71, %70 : vector<8x192xf32>
    %cst_43 = arith.constant 1.000000e+00 : f32
    %73 = vector.broadcast %cst_43 : f32 to vector<8x192xf32>
    %74 = arith.divf %73, %72 : vector<8x192xf32>
    %75 = vector.extract_strided_slice %74 {offsets = [0, 0], sizes = [8, 64], strides = [1, 1]} : vector<8x192xf32> to vector<8x64xf32>
    %76 = vector.extract_strided_slice %74 {offsets = [0, 64], sizes = [8, 64], strides = [1, 1]} : vector<8x192xf32> to vector<8x64xf32>
    %77 = vector.extract_strided_slice %74 {offsets = [0, 128], sizes = [8, 64], strides = [1, 1]} : vector<8x192xf32> to vector<8x64xf32>
    %78 = vector.extract_strided_slice %66 {offsets = [0, 192], sizes = [8, 64], strides = [1, 1]} : vector<8x256xf32> to vector<8x64xf32>
    %79 = math.tanh %78 : vector<8x64xf32>
    %80 = arith.mulf %76, %60 : vector<8x64xf32>
    %81 = arith.mulf %75, %79 : vector<8x64xf32>
    %82 = arith.addf %80, %81 : vector<8x64xf32>
    %83 = math.tanh %82 : vector<8x64xf32>
    %84 = arith.mulf %77, %83 : vector<8x64xf32>
    %c0_44 = arith.constant 0 : index
    %c0_45 = arith.constant 0 : index
    %85 = vector.load %arg11[%c0_44, %c0_45] : memref<8x64xf32, #tpu.memory_space<vmem>>, vector<8x64xf32>
    tpu.vector_store %arg11[%c0_44, %c0_45], %84 {strides = array<i32>} : memref<8x64xf32, #tpu.memory_space<vmem>>, vector<8x64xf32>,
    %c0_46 = arith.constant 0 : index
    %c0_47 = arith.constant 0 : index
    %86 = vector.load %arg12[%c0_46, %c0_47] : memref<8x64xf32, #tpu.memory_space<vmem>>, vector<8x64xf32>
    tpu.vector_store %arg12[%c0_46, %c0_47], %82 {strides = array<i32>} : memref<8x64xf32, #tpu.memory_space<vmem>>, vector<8x64xf32>,
    %c3_i32 = arith.constant 3 : i32
    %c0_48 = arith.constant 0 : index
    %c0_49 = arith.constant 0 : index
    %87 = vector.load %arg11[%c0_48, %c0_49] : memref<8x64xf32, #tpu.memory_space<vmem>>, vector<8x64xf32>
    %c0_50 = arith.constant 0 : index
    %c0_51 = arith.constant 0 : index
    %88 = vector.load %arg12[%c0_50, %c0_51] : memref<8x64xf32, #tpu.memory_space<vmem>>, vector<8x64xf32>
    %89 = arith.index_cast %c3_i32 : i32 to index
    %c0_52 = arith.constant 0 : index
    %c0_53 = arith.constant 0 : index
    %90 = vector.load %arg2[%89, %c0_52, %c0_53] : memref<8x8x256xf32, #tpu.memory_space<vmem>>, vector<1x8x256xf32>
    %91 = vector.shape_cast %90 : vector<1x8x256xf32> to vector<8x256xf32>
    %c0_54 = arith.constant 0 : index
    %c0_55 = arith.constant 0 : index
    %92 = vector.load %arg5[%c0_54, %c0_55] : memref<64x256xf32, #tpu.memory_space<vmem>>, vector<64x256xf32>
    %cst_56 = arith.constant dense<0.000000e+00> : vector<8x256xf32>
    %93 = tpu.matmul %87, %92, %cst_56 {dimension_numbers = #tpu.dot_dimension_numbers<[1], [0], [0], [1], [0, 0, 1, 1], [], []>} : vector<8x64xf32>, vector<64x256xf32>, vector<8x256xf32> -> vector<8x256xf32>
    %94 = arith.addf %91, %93 : vector<8x256xf32>
    %95 = vector.extract_strided_slice %94 {offsets = [0, 0], sizes = [8, 192], strides = [1, 1]} : vector<8x256xf32> to vector<8x192xf32>
    %cst_57 = arith.constant 0.000000e+00 : f32
    %96 = vector.broadcast %cst_57 : f32 to vector<8x192xf32>
    %97 = arith.subf %96, %95 : vector<8x192xf32>
    %98 = math.exp %97 : vector<8x192xf32>
    %cst_58 = arith.constant 1.000000e+00 : f32
    %99 = vector.broadcast %cst_58 : f32 to vector<8x192xf32>
    %100 = arith.addf %99, %98 : vector<8x192xf32>
    %cst_59 = arith.constant 1.000000e+00 : f32
    %101 = vector.broadcast %cst_59 : f32 to vector<8x192xf32>
    %102 = arith.divf %101, %100 : vector<8x192xf32>
    %103 = vector.extract_strided_slice %102 {offsets = [0, 0], sizes = [8, 64], strides = [1, 1]} : vector<8x192xf32> to vector<8x64xf32>
    %104 = vector.extract_strided_slice %102 {offsets = [0, 64], sizes = [8, 64], strides = [1, 1]} : vector<8x192xf32> to vector<8x64xf32>
    %105 = vector.extract_strided_slice %102 {offsets = [0, 128], sizes = [8, 64], strides = [1, 1]} : vector<8x192xf32> to vector<8x64xf32>
    %106 = vector.extract_strided_slice %94 {offsets = [0, 192], sizes = [8, 64], strides = [1, 1]} : vector<8x256xf32> to vector<8x64xf32>
    %107 = math.tanh %106 : vector<8x64xf32>
    %108 = arith.mulf %104, %88 : vector<8x64xf32>
    %109 = arith.mulf %103, %107 : vector<8x64xf32>
    %110 = arith.addf %108, %109 : vector<8x64xf32>
    %111 = math.tanh %110 : vector<8x64xf32>
    %112 = arith.mulf %105, %111 : vector<8x64xf32>
    %c0_60 = arith.constant 0 : index
    %c0_61 = arith.constant 0 : index
    %113 = vector.load %arg11[%c0_60, %c0_61] : memref<8x64xf32, #tpu.memory_space<vmem>>, vector<8x64xf32>
    tpu.vector_store %arg11[%c0_60, %c0_61], %112 {strides = array<i32>} : memref<8x64xf32, #tpu.memory_space<vmem>>, vector<8x64xf32>,
    %c0_62 = arith.constant 0 : index
    %c0_63 = arith.constant 0 : index
    %114 = vector.load %arg12[%c0_62, %c0_63] : memref<8x64xf32, #tpu.memory_space<vmem>>, vector<8x64xf32>
    tpu.vector_store %arg12[%c0_62, %c0_63], %110 {strides = array<i32>} : memref<8x64xf32, #tpu.memory_space<vmem>>, vector<8x64xf32>,
    %c4_i32 = arith.constant 4 : i32
    %c0_64 = arith.constant 0 : index
    %c0_65 = arith.constant 0 : index
    %115 = vector.load %arg11[%c0_64, %c0_65] : memref<8x64xf32, #tpu.memory_space<vmem>>, vector<8x64xf32>
    %c0_66 = arith.constant 0 : index
    %c0_67 = arith.constant 0 : index
    %116 = vector.load %arg12[%c0_66, %c0_67] : memref<8x64xf32, #tpu.memory_space<vmem>>, vector<8x64xf32>
    %117 = arith.index_cast %c4_i32 : i32 to index
    %c0_68 = arith.constant 0 : index
    %c0_69 = arith.constant 0 : index
    %118 = vector.load %arg2[%117, %c0_68, %c0_69] : memref<8x8x256xf32, #tpu.memory_space<vmem>>, vector<1x8x256xf32>
    %119 = vector.shape_cast %118 : vector<1x8x256xf32> to vector<8x256xf32>
    %c0_70 = arith.constant 0 : index
    %c0_71 = arith.constant 0 : index
    %120 = vector.load %arg5[%c0_70, %c0_71] : memref<64x256xf32, #tpu.memory_space<vmem>>, vector<64x256xf32>
    %cst_72 = arith.constant dense<0.000000e+00> : vector<8x256xf32>
    %121 = tpu.matmul %115, %120, %cst_72 {dimension_numbers = #tpu.dot_dimension_numbers<[1], [0], [0], [1], [0, 0, 1, 1], [], []>} : vector<8x64xf32>, vector<64x256xf32>, vector<8x256xf32> -> vector<8x256xf32>
    %122 = arith.addf %119, %121 : vector<8x256xf32>
    %123 = vector.extract_strided_slice %122 {offsets = [0, 0], sizes = [8, 192], strides = [1, 1]} : vector<8x256xf32> to vector<8x192xf32>
    %cst_73 = arith.constant 0.000000e+00 : f32
    %124 = vector.broadcast %cst_73 : f32 to vector<8x192xf32>
    %125 = arith.subf %124, %123 : vector<8x192xf32>
    %126 = math.exp %125 : vector<8x192xf32>
    %cst_74 = arith.constant 1.000000e+00 : f32
    %127 = vector.broadcast %cst_74 : f32 to vector<8x192xf32>
    %128 = arith.addf %127, %126 : vector<8x192xf32>
    %cst_75 = arith.constant 1.000000e+00 : f32
    %129 = vector.broadcast %cst_75 : f32 to vector<8x192xf32>
    %130 = arith.divf %129, %128 : vector<8x192xf32>
    %131 = vector.extract_strided_slice %130 {offsets = [0, 0], sizes = [8, 64], strides = [1, 1]} : vector<8x192xf32> to vector<8x64xf32>
    %132 = vector.extract_strided_slice %130 {offsets = [0, 64], sizes = [8, 64], strides = [1, 1]} : vector<8x192xf32> to vector<8x64xf32>
    %133 = vector.extract_strided_slice %130 {offsets = [0, 128], sizes = [8, 64], strides = [1, 1]} : vector<8x192xf32> to vector<8x64xf32>
    %134 = vector.extract_strided_slice %122 {offsets = [0, 192], sizes = [8, 64], strides = [1, 1]} : vector<8x256xf32> to vector<8x64xf32>
    %135 = math.tanh %134 : vector<8x64xf32>
    %136 = arith.mulf %132, %116 : vector<8x64xf32>
    %137 = arith.mulf %131, %135 : vector<8x64xf32>
    %138 = arith.addf %136, %137 : vector<8x64xf32>
    %139 = math.tanh %138 : vector<8x64xf32>
    %140 = arith.mulf %133, %139 : vector<8x64xf32>
    %c0_76 = arith.constant 0 : index
    %c0_77 = arith.constant 0 : index
    %141 = vector.load %arg11[%c0_76, %c0_77] : memref<8x64xf32, #tpu.memory_space<vmem>>, vector<8x64xf32>
    tpu.vector_store %arg11[%c0_76, %c0_77], %140 {strides = array<i32>} : memref<8x64xf32, #tpu.memory_space<vmem>>, vector<8x64xf32>,
    %c0_78 = arith.constant 0 : index
    %c0_79 = arith.constant 0 : index
    %142 = vector.load %arg12[%c0_78, %c0_79] : memref<8x64xf32, #tpu.memory_space<vmem>>, vector<8x64xf32>
    tpu.vector_store %arg12[%c0_78, %c0_79], %138 {strides = array<i32>} : memref<8x64xf32, #tpu.memory_space<vmem>>, vector<8x64xf32>,
    %c5_i32 = arith.constant 5 : i32
    %c0_80 = arith.constant 0 : index
    %c0_81 = arith.constant 0 : index
    %143 = vector.load %arg11[%c0_80, %c0_81] : memref<8x64xf32, #tpu.memory_space<vmem>>, vector<8x64xf32>
    %c0_82 = arith.constant 0 : index
    %c0_83 = arith.constant 0 : index
    %144 = vector.load %arg12[%c0_82, %c0_83] : memref<8x64xf32, #tpu.memory_space<vmem>>, vector<8x64xf32>
    %145 = arith.index_cast %c5_i32 : i32 to index
    %c0_84 = arith.constant 0 : index
    %c0_85 = arith.constant 0 : index
    %146 = vector.load %arg2[%145, %c0_84, %c0_85] : memref<8x8x256xf32, #tpu.memory_space<vmem>>, vector<1x8x256xf32>
    %147 = vector.shape_cast %146 : vector<1x8x256xf32> to vector<8x256xf32>
    %c0_86 = arith.constant 0 : index
    %c0_87 = arith.constant 0 : index
    %148 = vector.load %arg5[%c0_86, %c0_87] : memref<64x256xf32, #tpu.memory_space<vmem>>, vector<64x256xf32>
    %cst_88 = arith.constant dense<0.000000e+00> : vector<8x256xf32>
    %149 = tpu.matmul %143, %148, %cst_88 {dimension_numbers = #tpu.dot_dimension_numbers<[1], [0], [0], [1], [0, 0, 1, 1], [], []>} : vector<8x64xf32>, vector<64x256xf32>, vector<8x256xf32> -> vector<8x256xf32>
    %150 = arith.addf %147, %149 : vector<8x256xf32>
    %151 = vector.extract_strided_slice %150 {offsets = [0, 0], sizes = [8, 192], strides = [1, 1]} : vector<8x256xf32> to vector<8x192xf32>
    %cst_89 = arith.constant 0.000000e+00 : f32
    %152 = vector.broadcast %cst_89 : f32 to vector<8x192xf32>
    %153 = arith.subf %152, %151 : vector<8x192xf32>
    %154 = math.exp %153 : vector<8x192xf32>
    %cst_90 = arith.constant 1.000000e+00 : f32
    %155 = vector.broadcast %cst_90 : f32 to vector<8x192xf32>
    %156 = arith.addf %155, %154 : vector<8x192xf32>
    %cst_91 = arith.constant 1.000000e+00 : f32
    %157 = vector.broadcast %cst_91 : f32 to vector<8x192xf32>
    %158 = arith.divf %157, %156 : vector<8x192xf32>
    %159 = vector.extract_strided_slice %158 {offsets = [0, 0], sizes = [8, 64], strides = [1, 1]} : vector<8x192xf32> to vector<8x64xf32>
    %160 = vector.extract_strided_slice %158 {offsets = [0, 64], sizes = [8, 64], strides = [1, 1]} : vector<8x192xf32> to vector<8x64xf32>
    %161 = vector.extract_strided_slice %158 {offsets = [0, 128], sizes = [8, 64], strides = [1, 1]} : vector<8x192xf32> to vector<8x64xf32>
    %162 = vector.extract_strided_slice %150 {offsets = [0, 192], sizes = [8, 64], strides = [1, 1]} : vector<8x256xf32> to vector<8x64xf32>
    %163 = math.tanh %162 : vector<8x64xf32>
    %164 = arith.mulf %160, %144 : vector<8x64xf32>
    %165 = arith.mulf %159, %163 : vector<8x64xf32>
    %166 = arith.addf %164, %165 : vector<8x64xf32>
    %167 = math.tanh %166 : vector<8x64xf32>
    %168 = arith.mulf %161, %167 : vector<8x64xf32>
    %c0_92 = arith.constant 0 : index
    %c0_93 = arith.constant 0 : index
    %169 = vector.load %arg11[%c0_92, %c0_93] : memref<8x64xf32, #tpu.memory_space<vmem>>, vector<8x64xf32>
    tpu.vector_store %arg11[%c0_92, %c0_93], %168 {strides = array<i32>} : memref<8x64xf32, #tpu.memory_space<vmem>>, vector<8x64xf32>,
    %c0_94 = arith.constant 0 : index
    %c0_95 = arith.constant 0 : index
    %170 = vector.load %arg12[%c0_94, %c0_95] : memref<8x64xf32, #tpu.memory_space<vmem>>, vector<8x64xf32>
    tpu.vector_store %arg12[%c0_94, %c0_95], %166 {strides = array<i32>} : memref<8x64xf32, #tpu.memory_space<vmem>>, vector<8x64xf32>,
    %c6_i32 = arith.constant 6 : i32
    %c0_96 = arith.constant 0 : index
    %c0_97 = arith.constant 0 : index
    %171 = vector.load %arg11[%c0_96, %c0_97] : memref<8x64xf32, #tpu.memory_space<vmem>>, vector<8x64xf32>
    %c0_98 = arith.constant 0 : index
    %c0_99 = arith.constant 0 : index
    %172 = vector.load %arg12[%c0_98, %c0_99] : memref<8x64xf32, #tpu.memory_space<vmem>>, vector<8x64xf32>
    %173 = arith.index_cast %c6_i32 : i32 to index
    %c0_100 = arith.constant 0 : index
    %c0_101 = arith.constant 0 : index
    %174 = vector.load %arg2[%173, %c0_100, %c0_101] : memref<8x8x256xf32, #tpu.memory_space<vmem>>, vector<1x8x256xf32>
    %175 = vector.shape_cast %174 : vector<1x8x256xf32> to vector<8x256xf32>
    %c0_102 = arith.constant 0 : index
    %c0_103 = arith.constant 0 : index
    %176 = vector.load %arg5[%c0_102, %c0_103] : memref<64x256xf32, #tpu.memory_space<vmem>>, vector<64x256xf32>
    %cst_104 = arith.constant dense<0.000000e+00> : vector<8x256xf32>
    %177 = tpu.matmul %171, %176, %cst_104 {dimension_numbers = #tpu.dot_dimension_numbers<[1], [0], [0], [1], [0, 0, 1, 1], [], []>} : vector<8x64xf32>, vector<64x256xf32>, vector<8x256xf32> -> vector<8x256xf32>
    %178 = arith.addf %175, %177 : vector<8x256xf32>
    %179 = vector.extract_strided_slice %178 {offsets = [0, 0], sizes = [8, 192], strides = [1, 1]} : vector<8x256xf32> to vector<8x192xf32>
    %cst_105 = arith.constant 0.000000e+00 : f32
    %180 = vector.broadcast %cst_105 : f32 to vector<8x192xf32>
    %181 = arith.subf %180, %179 : vector<8x192xf32>
    %182 = math.exp %181 : vector<8x192xf32>
    %cst_106 = arith.constant 1.000000e+00 : f32
    %183 = vector.broadcast %cst_106 : f32 to vector<8x192xf32>
    %184 = arith.addf %183, %182 : vector<8x192xf32>
    %cst_107 = arith.constant 1.000000e+00 : f32
    %185 = vector.broadcast %cst_107 : f32 to vector<8x192xf32>
    %186 = arith.divf %185, %184 : vector<8x192xf32>
    %187 = vector.extract_strided_slice %186 {offsets = [0, 0], sizes = [8, 64], strides = [1, 1]} : vector<8x192xf32> to vector<8x64xf32>
    %188 = vector.extract_strided_slice %186 {offsets = [0, 64], sizes = [8, 64], strides = [1, 1]} : vector<8x192xf32> to vector<8x64xf32>
    %189 = vector.extract_strided_slice %186 {offsets = [0, 128], sizes = [8, 64], strides = [1, 1]} : vector<8x192xf32> to vector<8x64xf32>
    %190 = vector.extract_strided_slice %178 {offsets = [0, 192], sizes = [8, 64], strides = [1, 1]} : vector<8x256xf32> to vector<8x64xf32>
    %191 = math.tanh %190 : vector<8x64xf32>
    %192 = arith.mulf %188, %172 : vector<8x64xf32>
    %193 = arith.mulf %187, %191 : vector<8x64xf32>
    %194 = arith.addf %192, %193 : vector<8x64xf32>
    %195 = math.tanh %194 : vector<8x64xf32>
    %196 = arith.mulf %189, %195 : vector<8x64xf32>
    %c0_108 = arith.constant 0 : index
    %c0_109 = arith.constant 0 : index
    %197 = vector.load %arg11[%c0_108, %c0_109] : memref<8x64xf32, #tpu.memory_space<vmem>>, vector<8x64xf32>
    tpu.vector_store %arg11[%c0_108, %c0_109], %196 {strides = array<i32>} : memref<8x64xf32, #tpu.memory_space<vmem>>, vector<8x64xf32>,
    %c0_110 = arith.constant 0 : index
    %c0_111 = arith.constant 0 : index
    %198 = vector.load %arg12[%c0_110, %c0_111] : memref<8x64xf32, #tpu.memory_space<vmem>>, vector<8x64xf32>
    tpu.vector_store %arg12[%c0_110, %c0_111], %194 {strides = array<i32>} : memref<8x64xf32, #tpu.memory_space<vmem>>, vector<8x64xf32>,
    %c7_i32 = arith.constant 7 : i32
    %c0_112 = arith.constant 0 : index
    %c0_113 = arith.constant 0 : index
    %199 = vector.load %arg11[%c0_112, %c0_113] : memref<8x64xf32, #tpu.memory_space<vmem>>, vector<8x64xf32>
    %c0_114 = arith.constant 0 : index
    %c0_115 = arith.constant 0 : index
    %200 = vector.load %arg12[%c0_114, %c0_115] : memref<8x64xf32, #tpu.memory_space<vmem>>, vector<8x64xf32>
    %201 = arith.index_cast %c7_i32 : i32 to index
    %c0_116 = arith.constant 0 : index
    %c0_117 = arith.constant 0 : index
    %202 = vector.load %arg2[%201, %c0_116, %c0_117] : memref<8x8x256xf32, #tpu.memory_space<vmem>>, vector<1x8x256xf32>
    %203 = vector.shape_cast %202 : vector<1x8x256xf32> to vector<8x256xf32>
    %c0_118 = arith.constant 0 : index
    %c0_119 = arith.constant 0 : index
    %204 = vector.load %arg5[%c0_118, %c0_119] : memref<64x256xf32, #tpu.memory_space<vmem>>, vector<64x256xf32>
    %cst_120 = arith.constant dense<0.000000e+00> : vector<8x256xf32>
    %205 = tpu.matmul %199, %204, %cst_120 {dimension_numbers = #tpu.dot_dimension_numbers<[1], [0], [0], [1], [0, 0, 1, 1], [], []>} : vector<8x64xf32>, vector<64x256xf32>, vector<8x256xf32> -> vector<8x256xf32>
    %206 = arith.addf %203, %205 : vector<8x256xf32>
    %207 = vector.extract_strided_slice %206 {offsets = [0, 0], sizes = [8, 192], strides = [1, 1]} : vector<8x256xf32> to vector<8x192xf32>
    %cst_121 = arith.constant 0.000000e+00 : f32
    %208 = vector.broadcast %cst_121 : f32 to vector<8x192xf32>
    %209 = arith.subf %208, %207 : vector<8x192xf32>
    %210 = math.exp %209 : vector<8x192xf32>
    %cst_122 = arith.constant 1.000000e+00 : f32
    %211 = vector.broadcast %cst_122 : f32 to vector<8x192xf32>
    %212 = arith.addf %211, %210 : vector<8x192xf32>
    %cst_123 = arith.constant 1.000000e+00 : f32
    %213 = vector.broadcast %cst_123 : f32 to vector<8x192xf32>
    %214 = arith.divf %213, %212 : vector<8x192xf32>
    %215 = vector.extract_strided_slice %214 {offsets = [0, 0], sizes = [8, 64], strides = [1, 1]} : vector<8x192xf32> to vector<8x64xf32>
    %216 = vector.extract_strided_slice %214 {offsets = [0, 64], sizes = [8, 64], strides = [1, 1]} : vector<8x192xf32> to vector<8x64xf32>
    %217 = vector.extract_strided_slice %214 {offsets = [0, 128], sizes = [8, 64], strides = [1, 1]} : vector<8x192xf32> to vector<8x64xf32>
    %218 = vector.extract_strided_slice %206 {offsets = [0, 192], sizes = [8, 64], strides = [1, 1]} : vector<8x256xf32> to vector<8x64xf32>
    %219 = math.tanh %218 : vector<8x64xf32>
    %220 = arith.mulf %216, %200 : vector<8x64xf32>
    %221 = arith.mulf %215, %219 : vector<8x64xf32>
    %222 = arith.addf %220, %221 : vector<8x64xf32>
    %223 = math.tanh %222 : vector<8x64xf32>
    %224 = arith.mulf %217, %223 : vector<8x64xf32>
    %c0_124 = arith.constant 0 : index
    %c0_125 = arith.constant 0 : index
    %225 = vector.load %arg11[%c0_124, %c0_125] : memref<8x64xf32, #tpu.memory_space<vmem>>, vector<8x64xf32>
    tpu.vector_store %arg11[%c0_124, %c0_125], %224 {strides = array<i32>} : memref<8x64xf32, #tpu.memory_space<vmem>>, vector<8x64xf32>,
    %c0_126 = arith.constant 0 : index
    %c0_127 = arith.constant 0 : index
    %226 = vector.load %arg12[%c0_126, %c0_127] : memref<8x64xf32, #tpu.memory_space<vmem>>, vector<8x64xf32>
    tpu.vector_store %arg12[%c0_126, %c0_127], %222 {strides = array<i32>} : memref<8x64xf32, #tpu.memory_space<vmem>>, vector<8x64xf32>,
    %c8_i32 = arith.constant 8 : i32
    %c0_i32_128 = arith.constant 0 : i32
    %227 = arith.cmpi eq, %arg1, %c0_i32_128 : i32
    %228 = arith.extui %227 : i1 to i32
    %c0_i32_129 = arith.constant 0 : i32
    %229 = arith.cmpi ne, %228, %c0_i32_129 : i32
    scf.if %229 {
      %c0_130 = arith.constant 0 : index
      %c0_131 = arith.constant 0 : index
      %230 = vector.load %arg11[%c0_130, %c0_131] : memref<8x64xf32, #tpu.memory_space<vmem>>, vector<8x64xf32>
      %c0_132 = arith.constant 0 : index
      %c0_133 = arith.constant 0 : index
      %231 = vector.load %arg6[%c0_132, %c0_133] : memref<64x32xf32, #tpu.memory_space<vmem>>, vector<64x32xf32>
      %cst_134 = arith.constant dense<0.000000e+00> : vector<8x32xf32>
      %232 = tpu.matmul %230, %231, %cst_134 {dimension_numbers = #tpu.dot_dimension_numbers<[1], [0], [0], [1], [0, 0, 1, 1], [], []>} : vector<8x64xf32>, vector<64x32xf32>, vector<8x32xf32> -> vector<8x32xf32>
      %c0_135 = arith.constant 0 : index
      %c0_136 = arith.constant 0 : index
      %233 = vector.load %arg7[%c0_135, %c0_136] : memref<1x32xf32, #tpu.memory_space<vmem>>, vector<1x32xf32>
      %234 = vector.broadcast %233 : vector<1x32xf32> to vector<8x32xf32>
      %235 = arith.addf %232, %234 : vector<8x32xf32>
      %cst_137 = arith.constant 0.000000e+00 : f32
      %236 = vector.broadcast %cst_137 : f32 to vector<8x32xf32>
      %237 = arith.maximumf %235, %236 : vector<8x32xf32>
      %c0_138 = arith.constant 0 : index
      %c0_139 = arith.constant 0 : index
      %238 = vector.load %arg8[%c0_138, %c0_139] : memref<32x5xf32, #tpu.memory_space<vmem>>, vector<32x5xf32>
      %cst_140 = arith.constant dense<0.000000e+00> : vector<8x5xf32>
      %239 = tpu.matmul %237, %238, %cst_140 {dimension_numbers = #tpu.dot_dimension_numbers<[1], [0], [0], [1], [0, 0, 1, 1], [], []>} : vector<8x32xf32>, vector<32x5xf32>, vector<8x5xf32> -> vector<8x5xf32>
      %c0_141 = arith.constant 0 : index
      %c0_142 = arith.constant 0 : index
      %240 = vector.load %arg9[%c0_141, %c0_142] : memref<1x5xf32, #tpu.memory_space<vmem>>, vector<1x5xf32>
      %241 = vector.broadcast %240 : vector<1x5xf32> to vector<8x5xf32>
      %242 = arith.addf %239, %241 : vector<8x5xf32>
      %cst_143 = arith.constant dense<0xFF800000> : vector<8xf32>
      %243 = vector.multi_reduction <maximumf>, %242, %cst_143 [1] : vector<8x5xf32> to vector<8xf32>
      %244 = vector.shape_cast %243 : vector<8xf32> to vector<8x1xf32>
      %245 = vector.broadcast %244 : vector<8x1xf32> to vector<8x5xf32>
      %246 = arith.subf %242, %245 : vector<8x5xf32>
      %247 = math.exp %246 : vector<8x5xf32>
      %cst_144 = arith.constant dense<0.000000e+00> : vector<8xf32>
      %248 = vector.multi_reduction <add>, %247, %cst_144 [1] : vector<8x5xf32> to vector<8xf32>
      %249 = vector.shape_cast %248 : vector<8xf32> to vector<8x1xf32>
      %250 = math.log %249 : vector<8x1xf32>
      %251 = vector.broadcast %250 : vector<8x1xf32> to vector<8x5xf32>
      %252 = arith.subf %246, %251 : vector<8x5xf32>
      %c0_145 = arith.constant 0 : index
      %c0_146 = arith.constant 0 : index
      %253 = vector.load %arg10[%c0_145, %c0_146] : memref<8x5xf32, #tpu.memory_space<vmem>>, vector<8x5xf32>
      tpu.vector_store %arg10[%c0_145, %c0_146], %252 {strides = array<i32>} : memref<8x5xf32, #tpu.memory_space<vmem>>, vector<8x5xf32>,
    } else {
    }
    return
  }
  func.func @transform_0(%arg0: i32, %arg1: i32) -> (i32, i32, i32) {
    %c0_i32 = arith.constant 0 : i32
    %c0_i32_0 = arith.constant 0 : i32
    return %arg1, %arg0, %c0_i32 : i32, i32, i32
  }
  func.func @transform_1(%arg0: i32, %arg1: i32) -> (i32, i32) {
    %c0_i32 = arith.constant 0 : i32
    %c0_i32_0 = arith.constant 0 : i32
    return %arg0, %c0_i32 : i32, i32
  }
  func.func @transform_2(%arg0: i32, %arg1: i32) -> (i32, i32) {
    %c0_i32 = arith.constant 0 : i32
    %c0_i32_0 = arith.constant 0 : i32
    return %arg0, %c0_i32 : i32, i32
  }
  func.func @transform_3(%arg0: i32, %arg1: i32) -> (i32, i32) {
    %c0_i32 = arith.constant 0 : i32
    %c0_i32_0 = arith.constant 0 : i32
    %c0_i32_1 = arith.constant 0 : i32
    return %c0_i32, %c0_i32_0 : i32, i32
  }
  func.func @transform_4(%arg0: i32, %arg1: i32) -> (i32, i32) {
    %c0_i32 = arith.constant 0 : i32
    %c0_i32_0 = arith.constant 0 : i32
    %c0_i32_1 = arith.constant 0 : i32
    return %c0_i32, %c0_i32_0 : i32, i32
  }
  func.func @transform_5(%arg0: i32, %arg1: i32) -> (i32, i32) {
    %c0_i32 = arith.constant 0 : i32
    %c0_i32_0 = arith.constant 0 : i32
    %c0_i32_1 = arith.constant 0 : i32
    return %c0_i32, %c0_i32_0 : i32, i32
  }
  func.func @transform_6(%arg0: i32, %arg1: i32) -> (i32, i32) {
    %c0_i32 = arith.constant 0 : i32
    %c0_i32_0 = arith.constant 0 : i32
    %c0_i32_1 = arith.constant 0 : i32
    return %c0_i32, %c0_i32_0 : i32, i32
  }
  func.func @transform_7(%arg0: i32, %arg1: i32) -> (i32, i32) {
    %c0_i32 = arith.constant 0 : i32
    %c0_i32_0 = arith.constant 0 : i32
    %c0_i32_1 = arith.constant 0 : i32
    return %c0_i32, %c0_i32_0 : i32, i32
  }
  func.func @transform_8(%arg0: i32, %arg1: i32) -> (i32, i32) {
    %c0_i32 = arith.constant 0 : i32
    %c0_i32_0 = arith.constant 0 : i32
    return %arg0, %c0_i32 : i32, i32
  }
  func.func @transform_9(%arg0: i32, %arg1: i32) -> (i32, i32) {
    %c0_i32 = arith.constant 0 : i32
    %c0_i32_0 = arith.constant 0 : i32
    return %arg0, %c0_i32 : i32, i32
  }
  func.func @transform_10(%arg0: i32, %arg1: i32) -> (i32, i32) {
    %c0_i32 = arith.constant 0 : i32
    %c0_i32_0 = arith.constant 0 : i32
    return %arg0, %c0_i32 : i32, i32
  }
}

</mosaic_0001>

<llo_original>
// kernel: lstm_forward.1
$region0: #{lstm_forward.1}
  #allocation0 [shape = 'u32[]', space=smem, size = 0x4, offset = 0x4, fixed_abs, tag = 'smem constant byte address 0x4 - core index']
  #allocation1 [shape = 'u32[144,128]{1,0:T(1,128)}', space=vmem, size = 0x12000, scoped, tag = 'internal scratch']
  %s0 = inlined_call_operand.vmem [shape: f32[8,8,256], index: 0, kind: input, shape index: {}]
  %s1 = inlined_call_operand.vmem [shape: f32[8,64], index: 1, kind: input, shape index: {}]
  %s2 = inlined_call_operand.vmem [shape: f32[8,64], index: 2, kind: input, shape index: {}]
  %s3 = inlined_call_operand.vmem [shape: f32[64,256], index: 3, kind: input, shape index: {}]
  %s4 = inlined_call_operand.vmem [shape: f32[64,32], index: 4, kind: input, shape index: {}]
  %s5 = inlined_call_operand.vmem [shape: f32[1,32], index: 5, kind: input, shape index: {}]
  %s6 = inlined_call_operand.vmem [shape: f32[32,5], index: 6, kind: input, shape index: {}]
  %s7 = inlined_call_operand.vmem [shape: f32[1,5], index: 7, kind: input, shape index: {}]
  %s8 = inlined_call_operand.vmem [shape: f32[8,5], index: 8, kind: output, shape index: {0}]
  %s9 = inlined_call_operand.vmem [shape: f32[8,64], index: 9, kind: output, shape index: {1}]
  %s10 = inlined_call_operand.vmem [shape: f32[8,64], index: 10, kind: output, shape index: {2}]
  %11 = xla_tuple %s8, %s9, %s10
  %s12 = sld [smem:[#allocation0]]
  $region66: #{lstm_forward.1} parent=0
    _
  %s14 = ssub.s32 1, %s12
  %s15 = scalar_select 0, %s14, %s12
  // Predicated region
  $region2: #{lstm_forward.1} parent=0 // pred_check
    _
  $region3: #{lstm_forward.1} parent=0 // pred_check_branch
    %17 = sbr.rel (0) target = $region5
  $region4: #{lstm_forward.1} parent=0 // pred_region
    _
  $region5: #{lstm_forward.1} parent=0 // pred_fallthru
    _
  // Predicated region
  $region6: #{lstm_forward.1} parent=0 // pred_check
    _
  $region7: #{lstm_forward.1} parent=0 // pred_check_branch
    %19 = sbr.rel (0) target = $region9
  $region8: #{lstm_forward.1} parent=0 // pred_region
    _
  $region9: #{lstm_forward.1} parent=0 // pred_fallthru
    _
  // Predicated region
  $region10: #{lstm_forward.1} parent=0 // pred_check
    _
  $region11: #{lstm_forward.1} parent=0 // pred_check_branch
    %21 = sbr.rel (0) target = $region13
  $region12: #{lstm_forward.1} parent=0 // pred_region
    _
  $region13: #{lstm_forward.1} parent=0 // pred_fallthru
    _
  // Predicated region
  $region14: #{lstm_forward.1} parent=0 // pred_check
    _
  $region15: #{lstm_forward.1} parent=0 // pred_check_branch
    %23 = sbr.rel (0) target = $region17
  $region16: #{lstm_forward.1} parent=0 // pred_region
    _
  $region17: #{lstm_forward.1} parent=0 // pred_fallthru
    _
  // Predicated region
  $region18: #{lstm_forward.1} parent=0 // pred_check
    _
  $region19: #{lstm_forward.1} parent=0 // pred_check_branch
    %25 = sbr.rel (0) target = $region21
  $region20: #{lstm_forward.1} parent=0 // pred_region
    _
  $region21: #{lstm_forward.1} parent=0 // pred_fallthru
    _
  // Predicated region
  $region22: #{lstm_forward.1} parent=0 // pred_check
    _
  $region23: #{lstm_forward.1} parent=0 // pred_check_branch
    %27 = sbr.rel (0) target = $region25
  $region24: #{lstm_forward.1} parent=0 // pred_region
    _
  $region25: #{lstm_forward.1} parent=0 // pred_fallthru
    _
  // Predicated region
  $region26: #{lstm_forward.1} parent=0 // pred_check
    _
  $region27: #{lstm_forward.1} parent=0 // pred_check_branch
    %29 = sbr.rel (0) target = $region29
  $region28: #{lstm_forward.1} parent=0 // pred_region
    _
  $region29: #{lstm_forward.1} parent=0 // pred_fallthru
    _
  // Predicated region
  $region30: #{lstm_forward.1} parent=0 // pred_check
    _
  $region31: #{lstm_forward.1} parent=0 // pred_check_branch
    %31 = sbr.rel (0) target = $region33
  $region32: #{lstm_forward.1} parent=0 // pred_region
    _
  $region33: #{lstm_forward.1} parent=0 // pred_fallthru
    _
  %p32 = scmp.eq.s32.totalorder 0, 0
  // Predicated region
  $region34: #{lstm_forward.1} parent=0 // pred_check
    %p33 = pneg %p32
  $region35: #{lstm_forward.1} parent=0 // pred_check_branch
    %35 = sbr.rel (%p33) target = $region37
  $region36: #{lstm_forward.1} parent=0 // pred_region
    %v36 = vld [vmem:[%s1] sm:$0xff]
    %vm37 = vcmask 523264
    %38 = vst.msk [vmem:[%s9] sm:$0xff] %vm37, %v36
    %v39 = vld [vmem:[%s2] sm:$0xff]
    %40 = vst.msk [vmem:[%s10] sm:$0xff] %vm37, %v39
  $region37: #{lstm_forward.1} parent=0 // pred_fallthru
    _
  %v41 = vld [vmem:[%s9] sm:$0xff]
  %v42 = vld [vmem:[%s10] sm:$0xff]
  %v43 = vld [vmem:[%s0] sm:$0xff]
  %v44 = vld [vmem:[%s0 + $0x8] sm:$0xff]
  %v45 = vld [vmem:[%s3] sm:$0xff]
  %v46 = vld [vmem:[%s3 + $0x8] sm:$0xff]
  %v47 = vld [vmem:[%s3 + $0x10] sm:$0xff]
  %v48 = vld [vmem:[%s3 + $0x18] sm:$0xff]
  %v49 = vld [vmem:[%s3 + $0x20] sm:$0xff]
  %v50 = vld [vmem:[%s3 + $0x28] sm:$0xff]
  %v51 = vld [vmem:[%s3 + $0x30] sm:$0xff]
  %v52 = vld [vmem:[%s3 + $0x38] sm:$0xff]
  %v53 = vld [vmem:[%s3 + $0x40] sm:$0xff]
  %v54 = vld [vmem:[%s3 + $0x48] sm:$0xff]
  %v55 = vld [vmem:[%s3 + $0x50] sm:$0xff]
  %v56 = vld [vmem:[%s3 + $0x58] sm:$0xff]
  %v57 = vld [vmem:[%s3 + $0x60] sm:$0xff]
  %v58 = vld [vmem:[%s3 + $0x68] sm:$0xff]
  %v59 = vld [vmem:[%s3 + $0x70] sm:$0xff]
  %v60 = vld [vmem:[%s3 + $0x78] sm:$0xff]
  %vm61 = vcmask 523264
  %v63 = vsel %vm61, %v41, 0
  %65 = vmatprep.subr.mxu0 0.0
  %66 = vmatpush1.msra.mxu0 0.0
  %67 = vmatprep.subr.mxu0 0.0
  %68 = vmatpush1.msra.mxu0 0.0
  %69 = vmatprep.subr.mxu0 0.0
  %70 = vmatpush1.msra.mxu0 0.0
  %71 = vmatprep.subr.mxu0 0.0
  %72 = vmatpush1.msra.mxu0 0.0
  %73 = vmatprep.subr.mxu0 0.0
  %74 = vmatpush1.msra.mxu0 0.0
  %75 = vmatprep.subr.mxu0 0.0
  %76 = vmatpush1.msra.mxu0 0.0
  %77 = vmatprep.subr.mxu0 0.0
  %78 = vmatpush1.msra.mxu0 0.0
  %79 = vmatprep.subr.mxu0 0.0
  %80 = vmatpush1.msra.mxu0 0.0
  %81 = vmatprep.subr.mxu0 %v60
  %82 = vmatpush1.msra.mxu0 %v59
  %83 = vmatprep.subr.mxu0 %v58
  %84 = vmatpush1.msra.mxu0 %v57
  %85 = vmatprep.subr.mxu0 %v56
  %86 = vmatpush1.msra.mxu0 %v55
  %87 = vmatprep.subr.mxu0 %v54
  %88 = vmatpush1.msra.mxu0 %v53
  %89 = vmatprep.subr.mxu0 %v52
  %90 = vmatpush1.msra.mxu0 %v51
  %91 = vmatprep.subr.mxu0 %v50
  %92 = vmatpush1.msra.mxu0 %v49
  %93 = vmatprep.subr.mxu0 %v48
  %94 = vmatpush1.msra.mxu0 %v47
  %95 = vmatprep.subr.mxu0 %v46
  %96 = vmatpush1.msra.mxu0 %v45
  %97 = vmatprep.subr.mxu0 0.0
  %98 = vmatpush2.msra.mxu0 0.0
  %99 = vmatprep.subr.mxu0 0.0
  %100 = vmatpush2.msra.mxu0 0.0
  %101 = vmatprep.subr.mxu0 0.0
  %102 = vmatpush2.msra.mxu0 0.0
  %103 = vmatprep.subr.mxu0 0.0
  %104 = vmatpush2.msra.mxu0 0.0
  %105 = vmatprep.subr.mxu0 0.0
  %106 = vmatpush2.msra.mxu0 0.0
  %107 = vmatprep.subr.mxu0 0.0
  %108 = vmatpush2.msra.mxu0 0.0
  %109 = vmatprep.subr.mxu0 0.0
  %110 = vmatpush2.msra.mxu0 0.0
  %111 = vmatprep.subr.mxu0 0.0
  %112 = vmatpush2.msra.mxu0 0.0
  %113 = vmatprep.subr.mxu0 0.0
  %114 = vmatpush2.msra.mxu0 0.0
  %115 = vmatprep.subr.mxu0 0.0
  %116 = vmatpush2.msra.mxu0 0.0
  %117 = vmatprep.subr.mxu0 0.0
  %118 = vmatpush2.msra.mxu0 0.0
  %119 = vmatprep.subr.mxu0 0.0
  %120 = vmatpush2.msra.mxu0 0.0
  %121 = vmatprep.subr.mxu0 0.0
  %122 = vmatpush2.msra.mxu0 0.0
  %123 = vmatprep.subr.mxu0 0.0
  %124 = vmatpush2.msra.mxu0 0.0
  %125 = vmatprep.subr.mxu0 0.0
  %126 = vmatpush2.msra.mxu0 0.0
  %127 = vmatprep.subr.mxu0 0.0
  %128 = vmatpush2.msra.mxu0 0.0
  %129 = vmatprep.mubr.f32.mxu0 0.0
  %130 = vmatmul.mubr.f32.gmra.mxu0 %v63
  %v131 = vpop.f32.mrf.mxu0
  %v132 = vadd.f32 0.0, %v131
  %v133 = vpop.f32.mrf.mxu0
  %v134 = vadd.f32 0.0, %v133
  %135 = vdwg.mxu0
  %v136 = vadd.f32 %v43, %v132
  %v137 = vadd.f32 %v44, %v134
  %v138 = vsub.f32 0.0, %v136
  %v139 = vsub.f32 0.0, %v137
  %v140 = vmul.f32 %v138, 1.442695
  %v141 = vpow.pop %v140
  %v142 = vmul.f32 %v139, 1.442695
  %v143 = vpow.pop %v142
  %v144 = vadd.f32 %v141, 1.0
  %v145 = vadd.f32 %v143, 1.0
  %v146 = vrcp.pop %v144
  %v147 = vmul.f32 1.0, %v146
  %v148 = vrcp.pop %v145
  %v149 = vmul.f32 1.0, %v148
  %v150 = vtanh.pop %v137
  %152 = vrot.lane.b32.xlu0 %v42, 64
  %v153 = vpop.permute.xlu0 %152
  %v155 = vmul.f32 %v147, %v153
  %157 = vrot.lane.b32.xlu0 %v150, 64
  %v158 = vpop.permute.xlu0 %157
  %v160 = vmul.f32 %v147, %v158
  %162 = vrot.lane.b32.xlu0 %v160, 64
  %v163 = vpop.permute.xlu0 %162
  %v165 = vadd.f32 %v155, %v163
  %v166 = vtanh.pop %v165
  %168 = vrot.lane.b32.xlu0 %v166, 64
  %v169 = vpop.permute.xlu0 %168
  %v171 = vmul.f32 %v149, %v169
  %172 = vst.msk [vmem:[%s9] sm:$0xff] %vm61, %v171
  %174 = vrot.lane.b32.xlu0 %v165, 64
  %v175 = vpop.permute.xlu0 %174
  %177 = vst.msk [vmem:[%s10] sm:$0xff] %vm61, %v175
  %v178 = vld [vmem:[%s9] sm:$0xff]
  %v179 = vld [vmem:[%s10] sm:$0xff]
  %s180 = scalar_lea.vmem %s0, 16
  %v181 = vld [vmem:[%s180] sm:$0xff]
  %v182 = vld [vmem:[%s180 + $0x8] sm:$0xff]
  %v183 = vld [vmem:[%s3] sm:$0xff]
  %v184 = vld [vmem:[%s3 + $0x8] sm:$0xff]
  %v185 = vld [vmem:[%s3 + $0x10] sm:$0xff]
  %v186 = vld [vmem:[%s3 + $0x18] sm:$0xff]
  %v187 = vld [vmem:[%s3 + $0x20] sm:$0xff]
  %v188 = vld [vmem:[%s3 + $0x28] sm:$0xff]
  %v189 = vld [vmem:[%s3 + $0x30] sm:$0xff]
  %v190 = vld [vmem:[%s3 + $0x38] sm:$0xff]
  %v191 = vld [vmem:[%s3 + $0x40] sm:$0xff]
  %v192 = vld [vmem:[%s3 + $0x48] sm:$0xff]
  %v193 = vld [vmem:[%s3 + $0x50] sm:$0xff]
  %v194 = vld [vmem:[%s3 + $0x58] sm:$0xff]
  %v195 = vld [vmem:[%s3 + $0x60] sm:$0xff]
  %v196 = vld [vmem:[%s3 + $0x68] sm:$0xff]
  %v197 = vld [vmem:[%s3 + $0x70] sm:$0xff]
  %v198 = vld [vmem:[%s3 + $0x78] sm:$0xff]
  %v200 = vsel %vm61, %v178, 0
  %202 = vmatprep.subr.mxu0 0.0
  %203 = vmatpush1.msra.mxu0 0.0
  %204 = vmatprep.subr.mxu0 0.0
  %205 = vmatpush1.msra.mxu0 0.0
  %206 = vmatprep.subr.mxu0 0.0
  %207 = vmatpush1.msra.mxu0 0.0
  %208 = vmatprep.subr.mxu0 0.0
  %209 = vmatpush1.msra.mxu0 0.0
  %210 = vmatprep.subr.mxu0 0.0
  %211 = vmatpush1.msra.mxu0 0.0
  %212 = vmatprep.subr.mxu0 0.0
  %213 = vmatpush1.msra.mxu0 0.0
  %214 = vmatprep.subr.mxu0 0.0
  %215 = vmatpush1.msra.mxu0 0.0
  %216 = vmatprep.subr.mxu0 0.0
  %217 = vmatpush1.msra.mxu0 0.0
  %218 = vmatprep.subr.mxu0 %v198
  %219 = vmatpush1.msra.mxu0 %v197
  %220 = vmatprep.subr.mxu0 %v196
  %221 = vmatpush1.msra.mxu0 %v195
  %222 = vmatprep.subr.mxu0 %v194
  %223 = vmatpush1.msra.mxu0 %v193
  %224 = vmatprep.subr.mxu0 %v192
  %225 = vmatpush1.msra.mxu0 %v191
  %226 = vmatprep.subr.mxu0 %v190
  %227 = vmatpush1.msra.mxu0 %v189
  %228 = vmatprep.subr.mxu0 %v188
  %229 = vmatpush1.msra.mxu0 %v187
  %230 = vmatprep.subr.mxu0 %v186
  %231 = vmatpush1.msra.mxu0 %v185
  %232 = vmatprep.subr.mxu0 %v184
  %233 = vmatpush1.msra.mxu0 %v183
  %234 = vmatprep.subr.mxu0 0.0
  %235 = vmatpush2.msra.mxu0 0.0
  %236 = vmatprep.subr.mxu0 0.0
  %237 = vmatpush2.msra.mxu0 0.0
  %238 = vmatprep.subr.mxu0 0.0
  %239 = vmatpush2.msra.mxu0 0.0
  %240 = vmatprep.subr.mxu0 0.0
  %241 = vmatpush2.msra.mxu0 0.0
  %242 = vmatprep.subr.mxu0 0.0
  %243 = vmatpush2.msra.mxu0 0.0
  %244 = vmatprep.subr.mxu0 0.0
  %245 = vmatpush2.msra.mxu0 0.0
  %246 = vmatprep.subr.mxu0 0.0
  %247 = vmatpush2.msra.mxu0 0.0
  %248 = vmatprep.subr.mxu0 0.0
  %249 = vmatpush2.msra.mxu0 0.0
  %250 = vmatprep.subr.mxu0 0.0
  %251 = vmatpush2.msra.mxu0 0.0
  %252 = vmatprep.subr.mxu0 0.0
  %253 = vmatpush2.msra.mxu0 0.0
  %254 = vmatprep.subr.mxu0 0.0
  %255 = vmatpush2.msra.mxu0 0.0
  %256 = vmatprep.subr.mxu0 0.0
  %257 = vmatpush2.msra.mxu0 0.0
  %258 = vmatprep.subr.mxu0 0.0
  %259 = vmatpush2.msra.mxu0 0.0
  %260 = vmatprep.subr.mxu0 0.0
  %261 = vmatpush2.msra.mxu0 0.0
  %262 = vmatprep.subr.mxu0 0.0
  %263 = vmatpush2.msra.mxu0 0.0
  %264 = vmatprep.subr.mxu0 0.0
  %265 = vmatpush2.msra.mxu0 0.0
  %266 = vmatprep.mubr.f32.mxu0 0.0
  %267 = vmatmul.mubr.f32.gmra.mxu0 %v200
  %v268 = vpop.f32.mrf.mxu0
  %v269 = vadd.f32 0.0, %v268
  %v270 = vpop.f32.mrf.mxu0
  %v271 = vadd.f32 0.0, %v270
  %272 = vdwg.mxu0
  %v273 = vadd.f32 %v181, %v269
  %v274 = vadd.f32 %v182, %v271
  %v275 = vsub.f32 0.0, %v273
  %v276 = vsub.f32 0.0, %v274
  %v277 = vmul.f32 %v275, 1.442695
  %v278 = vpow.pop %v277
  %v279 = vmul.f32 %v276, 1.442695
  %v280 = vpow.pop %v279
  %v281 = vadd.f32 %v278, 1.0
  %v282 = vadd.f32 %v280, 1.0
  %v283 = vrcp.pop %v281
  %v284 = vmul.f32 1.0, %v283
  %v285 = vrcp.pop %v282
  %v286 = vmul.f32 1.0, %v285
  %v287 = vtanh.pop %v274
  %289 = vrot.lane.b32.xlu0 %v179, 64
  %v290 = vpop.permute.xlu0 %289
  %v292 = vmul.f32 %v284, %v290
  %294 = vrot.lane.b32.xlu0 %v287, 64
  %v295 = vpop.permute.xlu0 %294
  %v297 = vmul.f32 %v284, %v295
  %299 = vrot.lane.b32.xlu0 %v297, 64
  %v300 = vpop.permute.xlu0 %299
  %v302 = vadd.f32 %v292, %v300
  %v303 = vtanh.pop %v302
  %305 = vrot.lane.b32.xlu0 %v303, 64
  %v306 = vpop.permute.xlu0 %305
  %v308 = vmul.f32 %v286, %v306
  %309 = vst.msk [vmem:[%s9] sm:$0xff] %vm61, %v308
  %311 = vrot.lane.b32.xlu0 %v302, 64
  %v312 = vpop.permute.xlu0 %311
  %314 = vst.msk [vmem:[%s10] sm:$0xff] %vm61, %v312
  %v315 = vld [vmem:[%s9] sm:$0xff]
  %v316 = vld [vmem:[%s10] sm:$0xff]
  %s317 = scalar_lea.vmem %s0, 32
  %v318 = vld [vmem:[%s317] sm:$0xff]
  %v319 = vld [vmem:[%s317 + $0x8] sm:$0xff]
  %v320 = vld [vmem:[%s3] sm:$0xff]
  %v321 = vld [vmem:[%s3 + $0x8] sm:$0xff]
  %v322 = vld [vmem:[%s3 + $0x10] sm:$0xff]
  %v323 = vld [vmem:[%s3 + $0x18] sm:$0xff]
  %v324 = vld [vmem:[%s3 + $0x20] sm:$0xff]
  %v325 = vld [vmem:[%s3 + $0x28] sm:$0xff]
  %v326 = vld [vmem:[%s3 + $0x30] sm:$0xff]
  %v327 = vld [vmem:[%s3 + $0x38] sm:$0xff]
  %v328 = vld [vmem:[%s3 + $0x40] sm:$0xff]
  %v329 = vld [vmem:[%s3 + $0x48] sm:$0xff]
  %v330 = vld [vmem:[%s3 + $0x50] sm:$0xff]
  %v331 = vld [vmem:[%s3 + $0x58] sm:$0xff]
  %v332 = vld [vmem:[%s3 + $0x60] sm:$0xff]
  %v333 = vld [vmem:[%s3 + $0x68] sm:$0xff]
  %v334 = vld [vmem:[%s3 + $0x70] sm:$0xff]
  %v335 = vld [vmem:[%s3 + $0x78] sm:$0xff]
  %v337 = vsel %vm61, %v315, 0
  %339 = vmatprep.subr.mxu0 0.0
  %340 = vmatpush1.msra.mxu0 0.0
  %341 = vmatprep.subr.mxu0 0.0
  %342 = vmatpush1.msra.mxu0 0.0
  %343 = vmatprep.subr.mxu0 0.0
  %344 = vmatpush1.msra.mxu0 0.0
  %345 = vmatprep.subr.mxu0 0.0
  %346 = vmatpush1.msra.mxu0 0.0
  %347 = vmatprep.subr.mxu0 0.0
  %348 = vmatpush1.msra.mxu0 0.0
  %349 = vmatprep.subr.mxu0 0.0
  %350 = vmatpush1.msra.mxu0 0.0
  %351 = vmatprep.subr.mxu0 0.0
  %352 = vmatpush1.msra.mxu0 0.0
  %353 = vmatprep.subr.mxu0 0.0
  %354 = vmatpush1.msra.mxu0 0.0
  %355 = vmatprep.subr.mxu0 %v335
  %356 = vmatpush1.msra.mxu0 %v334
  %357 = vmatprep.subr.mxu0 %v333
  %358 = vmatpush1.msra.mxu0 %v332
  %359 = vmatprep.subr.mxu0 %v331
  %360 = vmatpush1.msra.mxu0 %v330
  %361 = vmatprep.subr.mxu0 %v329
  %362 = vmatpush1.msra.mxu0 %v328
  %363 = vmatprep.subr.mxu0 %v327
  %364 = vmatpush1.msra.mxu0 %v326
  %365 = vmatprep.subr.mxu0 %v325
  %366 = vmatpush1.msra.mxu0 %v324
  %367 = vmatprep.subr.mxu0 %v323
  %368 = vmatpush1.msra.mxu0 %v322
  %369 = vmatprep.subr.mxu0 %v321
  %370 = vmatpush1.msra.mxu0 %v320
  %371 = vmatprep.subr.mxu0 0.0
  %372 = vmatpush2.msra.mxu0 0.0
  %373 = vmatprep.subr.mxu0 0.0
  %374 = vmatpush2.msra.mxu0 0.0
  %375 = vmatprep.subr.mxu0 0.0
  %376 = vmatpush2.msra.mxu0 0.0
  %377 = vmatprep.subr.mxu0 0.0
  %378 = vmatpush2.msra.mxu0 0.0
  %379 = vmatprep.subr.mxu0 0.0
  %380 = vmatpush2.msra.mxu0 0.0
  %381 = vmatprep.subr.mxu0 0.0
  %382 = vmatpush2.msra.mxu0 0.0
  %383 = vmatprep.subr.mxu0 0.0
  %384 = vmatpush2.msra.mxu0 0.0
  %385 = vmatprep.subr.mxu0 0.0
  %386 = vmatpush2.msra.mxu0 0.0
  %387 = vmatprep.subr.mxu0 0.0
  %388 = vmatpush2.msra.mxu0 0.0
  %389 = vmatprep.subr.mxu0 0.0
  %390 = vmatpush2.msra.mxu0 0.0
  %391 = vmatprep.subr.mxu0 0.0
  %392 = vmatpush2.msra.mxu0 0.0
  %393 = vmatprep.subr.mxu0 0.0
  %394 = vmatpush2.msra.mxu0 0.0
  %395 = vmatprep.subr.mxu0 0.0
  %396 = vmatpush2.msra.mxu0 0.0
  %397 = vmatprep.subr.mxu0 0.0
  %398 = vmatpush2.msra.mxu0 0.0
  %399 = vmatprep.subr.mxu0 0.0
  %400 = vmatpush2.msra.mxu0 0.0
  %401 = vmatprep.subr.mxu0 0.0
  %402 = vmatpush2.msra.mxu0 0.0
  %403 = vmatprep.mubr.f32.mxu0 0.0
  %404 = vmatmul.mubr.f32.gmra.mxu0 %v337
  %v405 = vpop.f32.mrf.mxu0
  %v406 = vadd.f32 0.0, %v405
  %v407 = vpop.f32.mrf.mxu0
  %v408 = vadd.f32 0.0, %v407
  %409 = vdwg.mxu0
  %v410 = vadd.f32 %v318, %v406
  %v411 = vadd.f32 %v319, %v408
  %v412 = vsub.f32 0.0, %v410
  %v413 = vsub.f32 0.0, %v411
  %v414 = vmul.f32 %v412, 1.442695
  %v415 = vpow.pop %v414
  %v416 = vmul.f32 %v413, 1.442695
  %v417 = vpow.pop %v416
  %v418 = vadd.f32 %v415, 1.0
  %v419 = vadd.f32 %v417, 1.0
  %v420 = vrcp.pop %v418
  %v421 = vmul.f32 1.0, %v420
  %v422 = vrcp.pop %v419
  %v423 = vmul.f32 1.0, %v422
  %v424 = vtanh.pop %v411
  %426 = vrot.lane.b32.xlu0 %v316, 64
  %v427 = vpop.permute.xlu0 %426
  %v429 = vmul.f32 %v421, %v427
  %431 = vrot.lane.b32.xlu0 %v424, 64
  %v432 = vpop.permute.xlu0 %431
  %v434 = vmul.f32 %v421, %v432
  %436 = vrot.lane.b32.xlu0 %v434, 64
  %v437 = vpop.permute.xlu0 %436
  %v439 = vadd.f32 %v429, %v437
  %v440 = vtanh.pop %v439
  %442 = vrot.lane.b32.xlu0 %v440, 64
  %v443 = vpop.permute.xlu0 %442
  %v445 = vmul.f32 %v423, %v443
  %446 = vst.msk [vmem:[%s9] sm:$0xff] %vm61, %v445
  %448 = vrot.lane.b32.xlu0 %v439, 64
  %v449 = vpop.permute.xlu0 %448
  %451 = vst.msk [vmem:[%s10] sm:$0xff] %vm61, %v449
  %v452 = vld [vmem:[%s9] sm:$0xff]
  %v453 = vld [vmem:[%s10] sm:$0xff]
  %s454 = scalar_lea.vmem %s0, 48
  %v455 = vld [vmem:[%s454] sm:$0xff]
  %v456 = vld [vmem:[%s454 + $0x8] sm:$0xff]
  %v457 = vld [vmem:[%s3] sm:$0xff]
  %v458 = vld [vmem:[%s3 + $0x8] sm:$0xff]
  %v459 = vld [vmem:[%s3 + $0x10] sm:$0xff]
  %v460 = vld [vmem:[%s3 + $0x18] sm:$0xff]
  %v461 = vld [vmem:[%s3 + $0x20] sm:$0xff]
  %v462 = vld [vmem:[%s3 + $0x28] sm:$0xff]
  %v463 = vld [vmem:[%s3 + $0x30] sm:$0xff]
  %v464 = vld [vmem:[%s3 + $0x38] sm:$0xff]
  %v465 = vld [vmem:[%s3 + $0x40] sm:$0xff]
  %v466 = vld [vmem:[%s3 + $0x48] sm:$0xff]
  %v467 = vld [vmem:[%s3 + $0x50] sm:$0xff]
  %v468 = vld [vmem:[%s3 + $0x58] sm:$0xff]
  %v469 = vld [vmem:[%s3 + $0x60] sm:$0xff]
  %v470 = vld [vmem:[%s3 + $0x68] sm:$0xff]
  %v471 = vld [vmem:[%s3 + $0x70] sm:$0xff]
  %v472 = vld [vmem:[%s3 + $0x78] sm:$0xff]
  %v474 = vsel %vm61, %v452, 0
  %476 = vmatprep.subr.mxu0 0.0
  %477 = vmatpush1.msra.mxu0 0.0
  %478 = vmatprep.subr.mxu0 0.0
  %479 = vmatpush1.msra.mxu0 0.0
  %480 = vmatprep.subr.mxu0 0.0
  %481 = vmatpush1.msra.mxu0 0.0
  %482 = vmatprep.subr.mxu0 0.0
  %483 = vmatpush1.msra.mxu0 0.0
  %484 = vmatprep.subr.mxu0 0.0
  %485 = vmatpush1.msra.mxu0 0.0
  %486 = vmatprep.subr.mxu0 0.0
  %487 = vmatpush1.msra.mxu0 0.0
  %488 = vmatprep.subr.mxu0 0.0
  %489 = vmatpush1.msra.mxu0 0.0
  %490 = vmatprep.subr.mxu0 0.0
  %491 = vmatpush1.msra.mxu0 0.0
  %492 = vmatprep.subr.mxu0 %v472
  %493 = vmatpush1.msra.mxu0 %v471
  %494 = vmatprep.subr.mxu0 %v470
  %495 = vmatpush1.msra.mxu0 %v469
  %496 = vmatprep.subr.mxu0 %v468
  %497 = vmatpush1.msra.mxu0 %v467
  %498 = vmatprep.subr.mxu0 %v466
  %499 = vmatpush1.msra.mxu0 %v465
  %500 = vmatprep.subr.mxu0 %v464
  %501 = vmatpush1.msra.mxu0 %v463
  %502 = vmatprep.subr.mxu0 %v462
  %503 = vmatpush1.msra.mxu0 %v461
  %504 = vmatprep.subr.mxu0 %v460
  %505 = vmatpush1.msra.mxu0 %v459
  %506 = vmatprep.subr.mxu0 %v458
  %507 = vmatpush1.msra.mxu0 %v457
  %508 = vmatprep.subr.mxu0 0.0
  %509 = vmatpush2.msra.mxu0 0.0
  %510 = vmatprep.subr.mxu0 0.0
  %511 = vmatpush2.msra.mxu0 0.0
  %512 = vmatprep.subr.mxu0 0.0
  %513 = vmatpush2.msra.mxu0 0.0
  %514 = vmatprep.subr.mxu0 0.0
  %515 = vmatpush2.msra.mxu0 0.0
  %516 = vmatprep.subr.mxu0 0.0
  %517 = vmatpush2.msra.mxu0 0.0
  %518 = vmatprep.subr.mxu0 0.0
  %519 = vmatpush2.msra.mxu0 0.0
  %520 = vmatprep.subr.mxu0 0.0
  %521 = vmatpush2.msra.mxu0 0.0
  %522 = vmatprep.subr.mxu0 0.0
  %523 = vmatpush2.msra.mxu0 0.0
  %524 = vmatprep.subr.mxu0 0.0
  %525 = vmatpush2.msra.mxu0 0.0
  %526 = vmatprep.subr.mxu0 0.0
  %527 = vmatpush2.msra.mxu0 0.0
  %528 = vmatprep.subr.mxu0 0.0
  %529 = vmatpush2.msra.mxu0 0.0
  %530 = vmatprep.subr.mxu0 0.0
  %531 = vmatpush2.msra.mxu0 0.0
  %532 = vmatprep.subr.mxu0 0.0
  %533 = vmatpush2.msra.mxu0 0.0
  %534 = vmatprep.subr.mxu0 0.0
  %535 = vmatpush2.msra.mxu0 0.0
  %536 = vmatprep.subr.mxu0 0.0
  %537 = vmatpush2.msra.mxu0 0.0
  %538 = vmatprep.subr.mxu0 0.0
  %539 = vmatpush2.msra.mxu0 0.0
  %540 = vmatprep.mubr.f32.mxu0 0.0
  %541 = vmatmul.mubr.f32.gmra.mxu0 %v474
  %v542 = vpop.f32.mrf.mxu0
  %v543 = vadd.f32 0.0, %v542
  %v544 = vpop.f32.mrf.mxu0
  %v545 = vadd.f32 0.0, %v544
  %546 = vdwg.mxu0
  %v547 = vadd.f32 %v455, %v543
  %v548 = vadd.f32 %v456, %v545
  %v549 = vsub.f32 0.0, %v547
  %v550 = vsub.f32 0.0, %v548
  %v551 = vmul.f32 %v549, 1.442695
  %v552 = vpow.pop %v551
  %v553 = vmul.f32 %v550, 1.442695
  %v554 = vpow.pop %v553
  %v555 = vadd.f32 %v552, 1.0
  %v556 = vadd.f32 %v554, 1.0
  %v557 = vrcp.pop %v555
  %v558 = vmul.f32 1.0, %v557
  %v559 = vrcp.pop %v556
  %v560 = vmul.f32 1.0, %v559
  %v561 = vtanh.pop %v548
  %563 = vrot.lane.b32.xlu0 %v453, 64
  %v564 = vpop.permute.xlu0 %563
  %v566 = vmul.f32 %v558, %v564
  %568 = vrot.lane.b32.xlu0 %v561, 64
  %v569 = vpop.permute.xlu0 %568
  %v571 = vmul.f32 %v558, %v569
  %573 = vrot.lane.b32.xlu0 %v571, 64
  %v574 = vpop.permute.xlu0 %573
  %v576 = vadd.f32 %v566, %v574
  %v577 = vtanh.pop %v576
  %579 = vrot.lane.b32.xlu0 %v577, 64
  %v580 = vpop.permute.xlu0 %579
  %v582 = vmul.f32 %v560, %v580
  %583 = vst.msk [vmem:[%s9] sm:$0xff] %vm61, %v582
  %585 = vrot.lane.b32.xlu0 %v576, 64
  %v586 = vpop.permute.xlu0 %585
  %588 = vst.msk [vmem:[%s10] sm:$0xff] %vm61, %v586
  %v589 = vld [vmem:[%s9] sm:$0xff]
  %v590 = vld [vmem:[%s10] sm:$0xff]
  %s591 = scalar_lea.vmem %s0, 64
  %v592 = vld [vmem:[%s591] sm:$0xff]
  %v593 = vld [vmem:[%s591 + $0x8] sm:$0xff]
  %v594 = vld [vmem:[%s3] sm:$0xff]
  %v595 = vld [vmem:[%s3 + $0x8] sm:$0xff]
  %v596 = vld [vmem:[%s3 + $0x10] sm:$0xff]
  %v597 = vld [vmem:[%s3 + $0x18] sm:$0xff]
  %v598 = vld [vmem:[%s3 + $0x20] sm:$0xff]
  %v599 = vld [vmem:[%s3 + $0x28] sm:$0xff]
  %v600 = vld [vmem:[%s3 + $0x30] sm:$0xff]
  %v601 = vld [vmem:[%s3 + $0x38] sm:$0xff]
  %v602 = vld [vmem:[%s3 + $0x40] sm:$0xff]
  %v603 = vld [vmem:[%s3 + $0x48] sm:$0xff]
  %v604 = vld [vmem:[%s3 + $0x50] sm:$0xff]
  %v605 = vld [vmem:[%s3 + $0x58] sm:$0xff]
  %v606 = vld [vmem:[%s3 + $0x60] sm:$0xff]
  %v607 = vld [vmem:[%s3 + $0x68] sm:$0xff]
  %v608 = vld [vmem:[%s3 + $0x70] sm:$0xff]
  %v609 = vld [vmem:[%s3 + $0x78] sm:$0xff]
  %v611 = vsel %vm61, %v589, 0
  %613 = vmatprep.subr.mxu0 0.0
  %614 = vmatpush1.msra.mxu0 0.0
  %615 = vmatprep.subr.mxu0 0.0
  %616 = vmatpush1.msra.mxu0 0.0
  %617 = vmatprep.subr.mxu0 0.0
  %618 = vmatpush1.msra.mxu0 0.0
  %619 = vmatprep.subr.mxu0 0.0
  %620 = vmatpush1.msra.mxu0 0.0
  %621 = vmatprep.subr.mxu0 0.0
  %622 = vmatpush1.msra.mxu0 0.0
  %623 = vmatprep.subr.mxu0 0.0
  %624 = vmatpush1.msra.mxu0 0.0
  %625 = vmatprep.subr.mxu0 0.0
  %626 = vmatpush1.msra.mxu0 0.0
  %627 = vmatprep.subr.mxu0 0.0
  %628 = vmatpush1.msra.mxu0 0.0
  %629 = vmatprep.subr.mxu0 %v609
  %630 = vmatpush1.msra.mxu0 %v608
  %631 = vmatprep.subr.mxu0 %v607
  %632 = vmatpush1.msra.mxu0 %v606
  %633 = vmatprep.subr.mxu0 %v605
  %634 = vmatpush1.msra.mxu0 %v604
  %635 = vmatprep.subr.mxu0 %v603
  %636 = vmatpush1.msra.mxu0 %v602
  %637 = vmatprep.subr.mxu0 %v601
  %638 = vmatpush1.msra.mxu0 %v600
  %639 = vmatprep.subr.mxu0 %v599
  %640 = vmatpush1.msra.mxu0 %v598
  %641 = vmatprep.subr.mxu0 %v597
  %642 = vmatpush1.msra.mxu0 %v596
  %643 = vmatprep.subr.mxu0 %v595
  %644 = vmatpush1.msra.mxu0 %v594
  %645 = vmatprep.subr.mxu0 0.0
  %646 = vmatpush2.msra.mxu0 0.0
  %647 = vmatprep.subr.mxu0 0.0
  %648 = vmatpush2.msra.mxu0 0.0
  %649 = vmatprep.subr.mxu0 0.0
  %650 = vmatpush2.msra.mxu0 0.0
  %651 = vmatprep.subr.mxu0 0.0
  %652 = vmatpush2.msra.mxu0 0.0
  %653 = vmatprep.subr.mxu0 0.0
  %654 = vmatpush2.msra.mxu0 0.0
  %655 = vmatprep.subr.mxu0 0.0
  %656 = vmatpush2.msra.mxu0 0.0
  %657 = vmatprep.subr.mxu0 0.0
  %658 = vmatpush2.msra.mxu0 0.0
  %659 = vmatprep.subr.mxu0 0.0
  %660 = vmatpush2.msra.mxu0 0.0
  %661 = vmatprep.subr.mxu0 0.0
  %662 = vmatpush2.msra.mxu0 0.0
  %663 = vmatprep.subr.mxu0 0.0
  %664 = vmatpush2.msra.mxu0 0.0
  %665 = vmatprep.subr.mxu0 0.0
  %666 = vmatpush2.msra.mxu0 0.0
  %667 = vmatprep.subr.mxu0 0.0
  %668 = vmatpush2.msra.mxu0 0.0
  %669 = vmatprep.subr.mxu0 0.0
  %670 = vmatpush2.msra.mxu0 0.0
  %671 = vmatprep.subr.mxu0 0.0
  %672 = vmatpush2.msra.mxu0 0.0
  %673 = vmatprep.subr.mxu0 0.0
  %674 = vmatpush2.msra.mxu0 0.0
  %675 = vmatprep.subr.mxu0 0.0
  %676 = vmatpush2.msra.mxu0 0.0
  %677 = vmatprep.mubr.f32.mxu0 0.0
  %678 = vmatmul.mubr.f32.gmra.mxu0 %v611
  %v679 = vpop.f32.mrf.mxu0
  %v680 = vadd.f32 0.0, %v679
  %v681 = vpop.f32.mrf.mxu0
  %v682 = vadd.f32 0.0, %v681
  %683 = vdwg.mxu0
  %v684 = vadd.f32 %v592, %v680
  %v685 = vadd.f32 %v593, %v682
  %v686 = vsub.f32 0.0, %v684
  %v687 = vsub.f32 0.0, %v685
  %v688 = vmul.f32 %v686, 1.442695
  %v689 = vpow.pop %v688
  %v690 = vmul.f32 %v687, 1.442695
  %v691 = vpow.pop %v690
  %v692 = vadd.f32 %v689, 1.0
  %v693 = vadd.f32 %v691, 1.0
  %v694 = vrcp.pop %v692
  %v695 = vmul.f32 1.0, %v694
  %v696 = vrcp.pop %v693
  %v697 = vmul.f32 1.0, %v696
  %v698 = vtanh.pop %v685
  %700 = vrot.lane.b32.xlu0 %v590, 64
  %v701 = vpop.permute.xlu0 %700
  %v703 = vmul.f32 %v695, %v701
  %705 = vrot.lane.b32.xlu0 %v698, 64
  %v706 = vpop.permute.xlu0 %705
  %v708 = vmul.f32 %v695, %v706
  %710 = vrot.lane.b32.xlu0 %v708, 64
  %v711 = vpop.permute.xlu0 %710
  %v713 = vadd.f32 %v703, %v711
  %v714 = vtanh.pop %v713
  %716 = vrot.lane.b32.xlu0 %v714, 64
  %v717 = vpop.permute.xlu0 %716
  %v719 = vmul.f32 %v697, %v717
  %720 = vst.msk [vmem:[%s9] sm:$0xff] %vm61, %v719
  %722 = vrot.lane.b32.xlu0 %v713, 64
  %v723 = vpop.permute.xlu0 %722
  %725 = vst.msk [vmem:[%s10] sm:$0xff] %vm61, %v723
  %v726 = vld [vmem:[%s9] sm:$0xff]
  %v727 = vld [vmem:[%s10] sm:$0xff]
  %s728 = scalar_lea.vmem %s0, 80
  %v729 = vld [vmem:[%s728] sm:$0xff]
  %v730 = vld [vmem:[%s728 + $0x8] sm:$0xff]
  %v731 = vld [vmem:[%s3] sm:$0xff]
  %v732 = vld [vmem:[%s3 + $0x8] sm:$0xff]
  %v733 = vld [vmem:[%s3 + $0x10] sm:$0xff]
  %v734 = vld [vmem:[%s3 + $0x18] sm:$0xff]
  %v735 = vld [vmem:[%s3 + $0x20] sm:$0xff]
  %v736 = vld [vmem:[%s3 + $0x28] sm:$0xff]
  %v737 = vld [vmem:[%s3 + $0x30] sm:$0xff]
  %v738 = vld [vmem:[%s3 + $0x38] sm:$0xff]
  %v739 = vld [vmem:[%s3 + $0x40] sm:$0xff]
  %v740 = vld [vmem:[%s3 + $0x48] sm:$0xff]
  %v741 = vld [vmem:[%s3 + $0x50] sm:$0xff]
  %v742 = vld [vmem:[%s3 + $0x58] sm:$0xff]
  %v743 = vld [vmem:[%s3 + $0x60] sm:$0xff]
  %v744 = vld [vmem:[%s3 + $0x68] sm:$0xff]
  %v745 = vld [vmem:[%s3 + $0x70] sm:$0xff]
  %v746 = vld [vmem:[%s3 + $0x78] sm:$0xff]
  %v748 = vsel %vm61, %v726, 0
  %750 = vmatprep.subr.mxu0 0.0
  %751 = vmatpush1.msra.mxu0 0.0
  %752 = vmatprep.subr.mxu0 0.0
  %753 = vmatpush1.msra.mxu0 0.0
  %754 = vmatprep.subr.mxu0 0.0
  %755 = vmatpush1.msra.mxu0 0.0
  %756 = vmatprep.subr.mxu0 0.0
  %757 = vmatpush1.msra.mxu0 0.0
  %758 = vmatprep.subr.mxu0 0.0
  %759 = vmatpush1.msra.mxu0 0.0
  %760 = vmatprep.subr.mxu0 0.0
  %761 = vmatpush1.msra.mxu0 0.0
  %762 = vmatprep.subr.mxu0 0.0
  %763 = vmatpush1.msra.mxu0 0.0
  %764 = vmatprep.subr.mxu0 0.0
  %765 = vmatpush1.msra.mxu0 0.0
  %766 = vmatprep.subr.mxu0 %v746
  %767 = vmatpush1.msra.mxu0 %v745
  %768 = vmatprep.subr.mxu0 %v744
  %769 = vmatpush1.msra.mxu0 %v743
  %770 = vmatprep.subr.mxu0 %v742
  %771 = vmatpush1.msra.mxu0 %v741
  %772 = vmatprep.subr.mxu0 %v740
  %773 = vmatpush1.msra.mxu0 %v739
  %774 = vmatprep.subr.mxu0 %v738
  %775 = vmatpush1.msra.mxu0 %v737
  %776 = vmatprep.subr.mxu0 %v736
  %777 = vmatpush1.msra.mxu0 %v735
  %778 = vmatprep.subr.mxu0 %v734
  %779 = vmatpush1.msra.mxu0 %v733
  %780 = vmatprep.subr.mxu0 %v732
  %781 = vmatpush1.msra.mxu0 %v731
  %782 = vmatprep.subr.mxu0 0.0
  %783 = vmatpush2.msra.mxu0 0.0
  %784 = vmatprep.subr.mxu0 0.0
  %785 = vmatpush2.msra.mxu0 0.0
  %786 = vmatprep.subr.mxu0 0.0
  %787 = vmatpush2.msra.mxu0 0.0
  %788 = vmatprep.subr.mxu0 0.0
  %789 = vmatpush2.msra.mxu0 0.0
  %790 = vmatprep.subr.mxu0 0.0
  %791 = vmatpush2.msra.mxu0 0.0
  %792 = vmatprep.subr.mxu0 0.0
  %793 = vmatpush2.msra.mxu0 0.0
  %794 = vmatprep.subr.mxu0 0.0
  %795 = vmatpush2.msra.mxu0 0.0
  %796 = vmatprep.subr.mxu0 0.0
  %797 = vmatpush2.msra.mxu0 0.0
  %798 = vmatprep.subr.mxu0 0.0
  %799 = vmatpush2.msra.mxu0 0.0
  %800 = vmatprep.subr.mxu0 0.0
  %801 = vmatpush2.msra.mxu0 0.0
  %802 = vmatprep.subr.mxu0 0.0
  %803 = vmatpush2.msra.mxu0 0.0
  %804 = vmatprep.subr.mxu0 0.0
  %805 = vmatpush2.msra.mxu0 0.0
  %806 = vmatprep.subr.mxu0 0.0
  %807 = vmatpush2.msra.mxu0 0.0
  %808 = vmatprep.subr.mxu0 0.0
  %809 = vmatpush2.msra.mxu0 0.0
  %810 = vmatprep.subr.mxu0 0.0
  %811 = vmatpush2.msra.mxu0 0.0
  %812 = vmatprep.subr.mxu0 0.0
  %813 = vmatpush2.msra.mxu0 0.0
  %814 = vmatprep.mubr.f32.mxu0 0.0
  %815 = vmatmul.mubr.f32.gmra.mxu0 %v748
  %v816 = vpop.f32.mrf.mxu0
  %v817 = vadd.f32 0.0, %v816
  %v818 = vpop.f32.mrf.mxu0
  %v819 = vadd.f32 0.0, %v818
  %820 = vdwg.mxu0
  %v821 = vadd.f32 %v729, %v817
  %v822 = vadd.f32 %v730, %v819
  %v823 = vsub.f32 0.0, %v821
  %v824 = vsub.f32 0.0, %v822
  %v825 = vmul.f32 %v823, 1.442695
  %v826 = vpow.pop %v825
  %v827 = vmul.f32 %v824, 1.442695
  %v828 = vpow.pop %v827
  %v829 = vadd.f32 %v826, 1.0
  %v830 = vadd.f32 %v828, 1.0
  %v831 = vrcp.pop %v829
  %v832 = vmul.f32 1.0, %v831
  %v833 = vrcp.pop %v830
  %v834 = vmul.f32 1.0, %v833
  %v835 = vtanh.pop %v822
  %837 = vrot.lane.b32.xlu0 %v727, 64
  %v838 = vpop.permute.xlu0 %837
  %v840 = vmul.f32 %v832, %v838
  %842 = vrot.lane.b32.xlu0 %v835, 64
  %v843 = vpop.permute.xlu0 %842
  %v845 = vmul.f32 %v832, %v843
  %847 = vrot.lane.b32.xlu0 %v845, 64
  %v848 = vpop.permute.xlu0 %847
  %v850 = vadd.f32 %v840, %v848
  %v851 = vtanh.pop %v850
  %853 = vrot.lane.b32.xlu0 %v851, 64
  %v854 = vpop.permute.xlu0 %853
  %v856 = vmul.f32 %v834, %v854
  %857 = vst.msk [vmem:[%s9] sm:$0xff] %vm61, %v856
  %859 = vrot.lane.b32.xlu0 %v850, 64
  %v860 = vpop.permute.xlu0 %859
  %862 = vst.msk [vmem:[%s10] sm:$0xff] %vm61, %v860
  %v863 = vld [vmem:[%s9] sm:$0xff]
  %v864 = vld [vmem:[%s10] sm:$0xff]
  %s865 = scalar_lea.vmem %s0, 96
  %v866 = vld [vmem:[%s865] sm:$0xff]
  %v867 = vld [vmem:[%s865 + $0x8] sm:$0xff]
  %v868 = vld [vmem:[%s3] sm:$0xff]
  %v869 = vld [vmem:[%s3 + $0x8] sm:$0xff]
  %v870 = vld [vmem:[%s3 + $0x10] sm:$0xff]
  %v871 = vld [vmem:[%s3 + $0x18] sm:$0xff]
  %v872 = vld [vmem:[%s3 + $0x20] sm:$0xff]
  %v873 = vld [vmem:[%s3 + $0x28] sm:$0xff]
  %v874 = vld [vmem:[%s3 + $0x30] sm:$0xff]
  %v875 = vld [vmem:[%s3 + $0x38] sm:$0xff]
  %v876 = vld [vmem:[%s3 + $0x40] sm:$0xff]
  %v877 = vld [vmem:[%s3 + $0x48] sm:$0xff]
  %v878 = vld [vmem:[%s3 + $0x50] sm:$0xff]
  %v879 = vld [vmem:[%s3 + $0x58] sm:$0xff]
  %v880 = vld [vmem:[%s3 + $0x60] sm:$0xff]
  %v881 = vld [vmem:[%s3 + $0x68] sm:$0xff]
  %v882 = vld [vmem:[%s3 + $0x70] sm:$0xff]
  %v883 = vld [vmem:[%s3 + $0x78] sm:$0xff]
  %v885 = vsel %vm61, %v863, 0
  %887 = vmatprep.subr.mxu0 0.0
  %888 = vmatpush1.msra.mxu0 0.0
  %889 = vmatprep.subr.mxu0 0.0
  %890 = vmatpush1.msra.mxu0 0.0
  %891 = vmatprep.subr.mxu0 0.0
  %892 = vmatpush1.msra.mxu0 0.0
  %893 = vmatprep.subr.mxu0 0.0
  %894 = vmatpush1.msra.mxu0 0.0
  %895 = vmatprep.subr.mxu0 0.0
  %896 = vmatpush1.msra.mxu0 0.0
  %897 = vmatprep.subr.mxu0 0.0
  %898 = vmatpush1.msra.mxu0 0.0
  %899 = vmatprep.subr.mxu0 0.0
  %900 = vmatpush1.msra.mxu0 0.0
  %901 = vmatprep.subr.mxu0 0.0
  %902 = vmatpush1.msra.mxu0 0.0
  %903 = vmatprep.subr.mxu0 %v883
  %904 = vmatpush1.msra.mxu0 %v882
  %905 = vmatprep.subr.mxu0 %v881
  %906 = vmatpush1.msra.mxu0 %v880
  %907 = vmatprep.subr.mxu0 %v879
  %908 = vmatpush1.msra.mxu0 %v878
  %909 = vmatprep.subr.mxu0 %v877
  %910 = vmatpush1.msra.mxu0 %v876
  %911 = vmatprep.subr.mxu0 %v875
  %912 = vmatpush1.msra.mxu0 %v874
  %913 = vmatprep.subr.mxu0 %v873
  %914 = vmatpush1.msra.mxu0 %v872
  %915 = vmatprep.subr.mxu0 %v871
  %916 = vmatpush1.msra.mxu0 %v870
  %917 = vmatprep.subr.mxu0 %v869
  %918 = vmatpush1.msra.mxu0 %v868
  %919 = vmatprep.subr.mxu0 0.0
  %920 = vmatpush2.msra.mxu0 0.0
  %921 = vmatprep.subr.mxu0 0.0
  %922 = vmatpush2.msra.mxu0 0.0
  %923 = vmatprep.subr.mxu0 0.0
  %924 = vmatpush2.msra.mxu0 0.0
  %925 = vmatprep.subr.mxu0 0.0
  %926 = vmatpush2.msra.mxu0 0.0
  %927 = vmatprep.subr.mxu0 0.0
  %928 = vmatpush2.msra.mxu0 0.0
  %929 = vmatprep.subr.mxu0 0.0
  %930 = vmatpush2.msra.mxu0 0.0
  %931 = vmatprep.subr.mxu0 0.0
  %932 = vmatpush2.msra.mxu0 0.0
  %933 = vmatprep.subr.mxu0 0.0
  %934 = vmatpush2.msra.mxu0 0.0
  %935 = vmatprep.subr.mxu0 0.0
  %936 = vmatpush2.msra.mxu0 0.0
  %937 = vmatprep.subr.mxu0 0.0
  %938 = vmatpush2.msra.mxu0 0.0
  %939 = vmatprep.subr.mxu0 0.0
  %940 = vmatpush2.msra.mxu0 0.0
  %941 = vmatprep.subr.mxu0 0.0
  %942 = vmatpush2.msra.mxu0 0.0
  %943 = vmatprep.subr.mxu0 0.0
  %944 = vmatpush2.msra.mxu0 0.0
  %945 = vmatprep.subr.mxu0 0.0
  %946 = vmatpush2.msra.mxu0 0.0
  %947 = vmatprep.subr.mxu0 0.0
  %948 = vmatpush2.msra.mxu0 0.0
  %949 = vmatprep.subr.mxu0 0.0
  %950 = vmatpush2.msra.mxu0 0.0
  %951 = vmatprep.mubr.f32.mxu0 0.0
  %952 = vmatmul.mubr.f32.gmra.mxu0 %v885
  %v953 = vpop.f32.mrf.mxu0
  %v954 = vadd.f32 0.0, %v953
  %v955 = vpop.f32.mrf.mxu0
  %v956 = vadd.f32 0.0, %v955
  %957 = vdwg.mxu0
  %v958 = vadd.f32 %v866, %v954
  %v959 = vadd.f32 %v867, %v956
  %v960 = vsub.f32 0.0, %v958
  %v961 = vsub.f32 0.0, %v959
  %v962 = vmul.f32 %v960, 1.442695
  %v963 = vpow.pop %v962
  %v964 = vmul.f32 %v961, 1.442695
  %v965 = vpow.pop %v964
  %v966 = vadd.f32 %v963, 1.0
  %v967 = vadd.f32 %v965, 1.0
  %v968 = vrcp.pop %v966
  %v969 = vmul.f32 1.0, %v968
  %v970 = vrcp.pop %v967
  %v971 = vmul.f32 1.0, %v970
  %v972 = vtanh.pop %v959
  %974 = vrot.lane.b32.xlu0 %v864, 64
  %v975 = vpop.permute.xlu0 %974
  %v977 = vmul.f32 %v969, %v975
  %979 = vrot.lane.b32.xlu0 %v972, 64
  %v980 = vpop.permute.xlu0 %979
  %v982 = vmul.f32 %v969, %v980
  %984 = vrot.lane.b32.xlu0 %v982, 64
  %v985 = vpop.permute.xlu0 %984
  %v987 = vadd.f32 %v977, %v985
  %v988 = vtanh.pop %v987
  %990 = vrot.lane.b32.xlu0 %v988, 64
  %v991 = vpop.permute.xlu0 %990
  %v993 = vmul.f32 %v971, %v991
  %994 = vst.msk [vmem:[%s9] sm:$0xff] %vm61, %v993
  %996 = vrot.lane.b32.xlu0 %v987, 64
  %v997 = vpop.permute.xlu0 %996
  %999 = vst.msk [vmem:[%s10] sm:$0xff] %vm61, %v997
  %v1000 = vld [vmem:[%s9] sm:$0xff]
  %v1001 = vld [vmem:[%s10] sm:$0xff]
  %s1002 = scalar_lea.vmem %s0, 112
  %v1003 = vld [vmem:[%s1002] sm:$0xff]
  %v1004 = vld [vmem:[%s1002 + $0x8] sm:$0xff]
  %v1005 = vld [vmem:[%s3] sm:$0xff]
  %v1006 = vld [vmem:[%s3 + $0x8] sm:$0xff]
  %v1007 = vld [vmem:[%s3 + $0x10] sm:$0xff]
  %v1008 = vld [vmem:[%s3 + $0x18] sm:$0xff]
  %v1009 = vld [vmem:[%s3 + $0x20] sm:$0xff]
  %v1010 = vld [vmem:[%s3 + $0x28] sm:$0xff]
  %v1011 = vld [vmem:[%s3 + $0x30] sm:$0xff]
  %v1012 = vld [vmem:[%s3 + $0x38] sm:$0xff]
  %v1013 = vld [vmem:[%s3 + $0x40] sm:$0xff]
  %v1014 = vld [vmem:[%s3 + $0x48] sm:$0xff]
  %v1015 = vld [vmem:[%s3 + $0x50] sm:$0xff]
  %v1016 = vld [vmem:[%s3 + $0x58] sm:$0xff]
  %v1017 = vld [vmem:[%s3 + $0x60] sm:$0xff]
  %v1018 = vld [vmem:[%s3 + $0x68] sm:$0xff]
  %v1019 = vld [vmem:[%s3 + $0x70] sm:$0xff]
  %v1020 = vld [vmem:[%s3 + $0x78] sm:$0xff]
  %v1022 = vsel %vm61, %v1000, 0
  %1024 = vmatprep.subr.mxu0 0.0
  %1025 = vmatpush1.msra.mxu0 0.0
  %1026 = vmatprep.subr.mxu0 0.0
  %1027 = vmatpush1.msra.mxu0 0.0
  %1028 = vmatprep.subr.mxu0 0.0
  %1029 = vmatpush1.msra.mxu0 0.0
  %1030 = vmatprep.subr.mxu0 0.0
  %1031 = vmatpush1.msra.mxu0 0.0
  %1032 = vmatprep.subr.mxu0 0.0
  %1033 = vmatpush1.msra.mxu0 0.0
  %1034 = vmatprep.subr.mxu0 0.0
  %1035 = vmatpush1.msra.mxu0 0.0
  %1036 = vmatprep.subr.mxu0 0.0
  %1037 = vmatpush1.msra.mxu0 0.0
  %1038 = vmatprep.subr.mxu0 0.0
  %1039 = vmatpush1.msra.mxu0 0.0
  %1040 = vmatprep.subr.mxu0 %v1020
  %1041 = vmatpush1.msra.mxu0 %v1019
  %1042 = vmatprep.subr.mxu0 %v1018
  %1043 = vmatpush1.msra.mxu0 %v1017
  %1044 = vmatprep.subr.mxu0 %v1016
  %1045 = vmatpush1.msra.mxu0 %v1015
  %1046 = vmatprep.subr.mxu0 %v1014
  %1047 = vmatpush1.msra.mxu0 %v1013
  %1048 = vmatprep.subr.mxu0 %v1012
  %1049 = vmatpush1.msra.mxu0 %v1011
  %1050 = vmatprep.subr.mxu0 %v1010
  %1051 = vmatpush1.msra.mxu0 %v1009
  %1052 = vmatprep.subr.mxu0 %v1008
  %1053 = vmatpush1.msra.mxu0 %v1007
  %1054 = vmatprep.subr.mxu0 %v1006
  %1055 = vmatpush1.msra.mxu0 %v1005
  %1056 = vmatprep.subr.mxu0 0.0
  %1057 = vmatpush2.msra.mxu0 0.0
  %1058 = vmatprep.subr.mxu0 0.0
  %1059 = vmatpush2.msra.mxu0 0.0
  %1060 = vmatprep.subr.mxu0 0.0
  %1061 = vmatpush2.msra.mxu0 0.0
  %1062 = vmatprep.subr.mxu0 0.0
  %1063 = vmatpush2.msra.mxu0 0.0
  %1064 = vmatprep.subr.mxu0 0.0
  %1065 = vmatpush2.msra.mxu0 0.0
  %1066 = vmatprep.subr.mxu0 0.0
  %1067 = vmatpush2.msra.mxu0 0.0
  %1068 = vmatprep.subr.mxu0 0.0
  %1069 = vmatpush2.msra.mxu0 0.0
  %1070 = vmatprep.subr.mxu0 0.0
  %1071 = vmatpush2.msra.mxu0 0.0
  %1072 = vmatprep.subr.mxu0 0.0
  %1073 = vmatpush2.msra.mxu0 0.0
  %1074 = vmatprep.subr.mxu0 0.0
  %1075 = vmatpush2.msra.mxu0 0.0
  %1076 = vmatprep.subr.mxu0 0.0
  %1077 = vmatpush2.msra.mxu0 0.0
  %1078 = vmatprep.subr.mxu0 0.0
  %1079 = vmatpush2.msra.mxu0 0.0
  %1080 = vmatprep.subr.mxu0 0.0
  %1081 = vmatpush2.msra.mxu0 0.0
  %1082 = vmatprep.subr.mxu0 0.0
  %1083 = vmatpush2.msra.mxu0 0.0
  %1084 = vmatprep.subr.mxu0 0.0
  %1085 = vmatpush2.msra.mxu0 0.0
  %1086 = vmatprep.subr.mxu0 0.0
  %1087 = vmatpush2.msra.mxu0 0.0
  %1088 = vmatprep.mubr.f32.mxu0 0.0
  %1089 = vmatmul.mubr.f32.gmra.mxu0 %v1022
  %v1090 = vpop.f32.mrf.mxu0
  %v1091 = vadd.f32 0.0, %v1090
  %v1092 = vpop.f32.mrf.mxu0
  %v1093 = vadd.f32 0.0, %v1092
  %1094 = vdwg.mxu0
  %v1095 = vadd.f32 %v1003, %v1091
  %v1096 = vadd.f32 %v1004, %v1093
  %v1097 = vsub.f32 0.0, %v1095
  %v1098 = vsub.f32 0.0, %v1096
  %v1099 = vmul.f32 %v1097, 1.442695
  %v1100 = vpow.pop %v1099
  %v1101 = vmul.f32 %v1098, 1.442695
  %v1102 = vpow.pop %v1101
  %v1103 = vadd.f32 %v1100, 1.0
  %v1104 = vadd.f32 %v1102, 1.0
  %v1105 = vrcp.pop %v1103
  %v1106 = vmul.f32 1.0, %v1105
  %v1107 = vrcp.pop %v1104
  %v1108 = vmul.f32 1.0, %v1107
  %v1109 = vtanh.pop %v1096
  %1111 = vrot.lane.b32.xlu0 %v1001, 64
  %v1112 = vpop.permute.xlu0 %1111
  %v1114 = vmul.f32 %v1106, %v1112
  %1116 = vrot.lane.b32.xlu0 %v1109, 64
  %v1117 = vpop.permute.xlu0 %1116
  %v1119 = vmul.f32 %v1106, %v1117
  %1121 = vrot.lane.b32.xlu0 %v1119, 64
  %v1122 = vpop.permute.xlu0 %1121
  %v1124 = vadd.f32 %v1114, %v1122
  %v1125 = vtanh.pop %v1124
  %1127 = vrot.lane.b32.xlu0 %v1125, 64
  %v1128 = vpop.permute.xlu0 %1127
  %v1130 = vmul.f32 %v1108, %v1128
  %1131 = vst.msk [vmem:[%s9] sm:$0xff] %vm61, %v1130
  %1133 = vrot.lane.b32.xlu0 %v1124, 64
  %v1134 = vpop.permute.xlu0 %1133
  %1136 = vst.msk [vmem:[%s10] sm:$0xff] %vm61, %v1134
  // Predicated region
  $region38: #{lstm_forward.1} parent=0 // pred_check
    %p1137 = pneg %p32
  $region39: #{lstm_forward.1} parent=0 // pred_check_branch
    %1139 = sbr.rel (%p1137) target = $region41
  $region40: #{lstm_forward.1} parent=0 // pred_region
    %v1140 = vld [vmem:[%s9] sm:$0xff]
    %v1141 = vld [vmem:[%s4] sm:$0xff]
    %v1142 = vld [vmem:[%s4 + $0x8] sm:$0xff]
    %v1143 = vld [vmem:[%s4 + $0x10] sm:$0xff]
    %v1144 = vld [vmem:[%s4 + $0x18] sm:$0xff]
    %v1145 = vld [vmem:[%s4 + $0x20] sm:$0xff]
    %v1146 = vld [vmem:[%s4 + $0x28] sm:$0xff]
    %v1147 = vld [vmem:[%s4 + $0x30] sm:$0xff]
    %v1148 = vld [vmem:[%s4 + $0x38] sm:$0xff]
    %v1149 = vld [vmem:[%s5] sm:$0x1]
    %v1151 = vlaneseq
    %v1152 = vshrl.u32 %v1151, 7
    %v1153 = vsub.s32 0, %v1152
    %v1154 = vrot.slane %v1149, %v1153
    %v1157 = vsel %vm61, %v1140, 0
    %1159 = vmatprep.subr.mxu0 0.0
    %1160 = vmatpush1.msra.mxu0 0.0
    %1161 = vmatprep.subr.mxu0 0.0
    %1162 = vmatpush1.msra.mxu0 0.0
    %1163 = vmatprep.subr.mxu0 0.0
    %1164 = vmatpush1.msra.mxu0 0.0
    %1165 = vmatprep.subr.mxu0 0.0
    %1166 = vmatpush1.msra.mxu0 0.0
    %1167 = vmatprep.subr.mxu0 0.0
    %1168 = vmatpush1.msra.mxu0 0.0
    %1169 = vmatprep.subr.mxu0 0.0
    %1170 = vmatpush1.msra.mxu0 0.0
    %1171 = vmatprep.subr.mxu0 0.0
    %1172 = vmatpush1.msra.mxu0 0.0
    %1173 = vmatprep.subr.mxu0 0.0
    %1174 = vmatpush1.msra.mxu0 0.0
    %1175 = vmatprep.subr.mxu0 0.0
    %1176 = vmatpush1.msra.mxu0 %v1148
    %1177 = vmatprep.subr.mxu0 0.0
    %1178 = vmatpush1.msra.mxu0 %v1147
    %1179 = vmatprep.subr.mxu0 0.0
    %1180 = vmatpush1.msra.mxu0 %v1146
    %1181 = vmatprep.subr.mxu0 0.0
    %1182 = vmatpush1.msra.mxu0 %v1145
    %1183 = vmatprep.subr.mxu0 0.0
    %1184 = vmatpush1.msra.mxu0 %v1144
    %1185 = vmatprep.subr.mxu0 0.0
    %1186 = vmatpush1.msra.mxu0 %v1143
    %1187 = vmatprep.subr.mxu0 0.0
    %1188 = vmatpush1.msra.mxu0 %v1142
    %1189 = vmatprep.subr.mxu0 0.0
    %1190 = vmatpush1.msra.mxu0 %v1141
    %1191 = vmatprep.subr.mxu0 0.0
    %1192 = vmatpush2.msra.mxu0 0.0
    %1193 = vmatprep.subr.mxu0 0.0
    %1194 = vmatpush2.msra.mxu0 0.0
    %1195 = vmatprep.subr.mxu0 0.0
    %1196 = vmatpush2.msra.mxu0 0.0
    %1197 = vmatprep.subr.mxu0 0.0
    %1198 = vmatpush2.msra.mxu0 0.0
    %1199 = vmatprep.subr.mxu0 0.0
    %1200 = vmatpush2.msra.mxu0 0.0
    %1201 = vmatprep.subr.mxu0 0.0
    %1202 = vmatpush2.msra.mxu0 0.0
    %1203 = vmatprep.subr.mxu0 0.0
    %1204 = vmatpush2.msra.mxu0 0.0
    %1205 = vmatprep.subr.mxu0 0.0
    %1206 = vmatpush2.msra.mxu0 0.0
    %1207 = vmatprep.subr.mxu0 0.0
    %1208 = vmatpush2.msra.mxu0 0.0
    %1209 = vmatprep.subr.mxu0 0.0
    %1210 = vmatpush2.msra.mxu0 0.0
    %1211 = vmatprep.subr.mxu0 0.0
    %1212 = vmatpush2.msra.mxu0 0.0
    %1213 = vmatprep.subr.mxu0 0.0
    %1214 = vmatpush2.msra.mxu0 0.0
    %1215 = vmatprep.subr.mxu0 0.0
    %1216 = vmatpush2.msra.mxu0 0.0
    %1217 = vmatprep.subr.mxu0 0.0
    %1218 = vmatpush2.msra.mxu0 0.0
    %1219 = vmatprep.subr.mxu0 0.0
    %1220 = vmatpush2.msra.mxu0 0.0
    %1221 = vmatprep.subr.mxu0 0.0
    %1222 = vmatpush2.msra.mxu0 0.0
    %1223 = vmatprep.mubr.f32.mxu0 0.0
    %1224 = vmatmul.mubr.f32.gmra.mxu0 %v1157
    %v1225 = vpop.f32.mrf.mxu0
    %v1226 = vadd.f32 %v1154, %v1225
    %v1227 = vpop.f32.mrf.mxu0
    %1228 = vdwg.mxu0
    %v1229 = vmax.f32 %v1226, 0.0
    %v1230 = vld [vmem:[%s6] sm:$0xff]
    %v1231 = vld [vmem:[%s6 + $0x8] sm:$0xff]
    %v1232 = vld [vmem:[%s6 + $0x10] sm:$0xff]
    %v1233 = vld [vmem:[%s6 + $0x18] sm:$0xff]
    %v1234 = vld [vmem:[%s7] sm:$0x1]
    %v1236 = vlaneseq
    %v1237 = vshrl.u32 %v1236, 7
    %v1238 = vsub.s32 0, %v1237
    %v1239 = vrot.slane %v1234, %v1238
    %vm1241 = vcmask 261120
    %v1243 = vsel %vm1241, %v1229, 0
    %1245 = vmatprep.subr.mxu0 0.0
    %1246 = vmatpush1.msra.mxu0 0.0
    %1247 = vmatprep.subr.mxu0 0.0
    %1248 = vmatpush1.msra.mxu0 0.0
    %1249 = vmatprep.subr.mxu0 0.0
    %1250 = vmatpush1.msra.mxu0 0.0
    %1251 = vmatprep.subr.mxu0 0.0
    %1252 = vmatpush1.msra.mxu0 0.0
    %1253 = vmatprep.subr.mxu0 0.0
    %1254 = vmatpush1.msra.mxu0 0.0
    %1255 = vmatprep.subr.mxu0 0.0
    %1256 = vmatpush1.msra.mxu0 0.0
    %1257 = vmatprep.subr.mxu0 0.0
    %1258 = vmatpush1.msra.mxu0 0.0
    %1259 = vmatprep.subr.mxu0 0.0
    %1260 = vmatpush1.msra.mxu0 0.0
    %1261 = vmatprep.subr.mxu0 0.0
    %1262 = vmatpush1.msra.mxu0 0.0
    %1263 = vmatprep.subr.mxu0 0.0
    %1264 = vmatpush1.msra.mxu0 0.0
    %1265 = vmatprep.subr.mxu0 0.0
    %1266 = vmatpush1.msra.mxu0 0.0
    %1267 = vmatprep.subr.mxu0 0.0
    %1268 = vmatpush1.msra.mxu0 0.0
    %1269 = vmatprep.subr.mxu0 0.0
    %1270 = vmatpush1.msra.mxu0 %v1233
    %1271 = vmatprep.subr.mxu0 0.0
    %1272 = vmatpush1.msra.mxu0 %v1232
    %1273 = vmatprep.subr.mxu0 0.0
    %1274 = vmatpush1.msra.mxu0 %v1231
    %1275 = vmatprep.subr.mxu0 0.0
    %1276 = vmatpush1.msra.mxu0 %v1230
    %1277 = vmatprep.subr.mxu0 0.0
    %1278 = vmatpush2.msra.mxu0 0.0
    %1279 = vmatprep.subr.mxu0 0.0
    %1280 = vmatpush2.msra.mxu0 0.0
    %1281 = vmatprep.subr.mxu0 0.0
    %1282 = vmatpush2.msra.mxu0 0.0
    %1283 = vmatprep.subr.mxu0 0.0
    %1284 = vmatpush2.msra.mxu0 0.0
    %1285 = vmatprep.subr.mxu0 0.0
    %1286 = vmatpush2.msra.mxu0 0.0
    %1287 = vmatprep.subr.mxu0 0.0
    %1288 = vmatpush2.msra.mxu0 0.0
    %1289 = vmatprep.subr.mxu0 0.0
    %1290 = vmatpush2.msra.mxu0 0.0
    %1291 = vmatprep.subr.mxu0 0.0
    %1292 = vmatpush2.msra.mxu0 0.0
    %1293 = vmatprep.subr.mxu0 0.0
    %1294 = vmatpush2.msra.mxu0 0.0
    %1295 = vmatprep.subr.mxu0 0.0
    %1296 = vmatpush2.msra.mxu0 0.0
    %1297 = vmatprep.subr.mxu0 0.0
    %1298 = vmatpush2.msra.mxu0 0.0
    %1299 = vmatprep.subr.mxu0 0.0
    %1300 = vmatpush2.msra.mxu0 0.0
    %1301 = vmatprep.subr.mxu0 0.0
    %1302 = vmatpush2.msra.mxu0 0.0
    %1303 = vmatprep.subr.mxu0 0.0
    %1304 = vmatpush2.msra.mxu0 0.0
    %1305 = vmatprep.subr.mxu0 0.0
    %1306 = vmatpush2.msra.mxu0 0.0
    %1307 = vmatprep.subr.mxu0 0.0
    %1308 = vmatpush2.msra.mxu0 0.0
    %1309 = vmatprep.mubr.f32.mxu0 0.0
    %1310 = vmatmul.mubr.f32.gmra.mxu0 %v1243
    %v1311 = vpop.f32.mrf.mxu0
    %v1312 = vadd.f32 %v1239, %v1311
    %v1313 = vpop.f32.mrf.mxu0
    %1314 = vdwg.mxu0
    %vm1315 = vcmask 39936
    %v1316 = vsel %vm1315, %v1312, -inf
    %1317 = vmax.xlane.f32.xlu0 %v1316
    %v1318 = vpop.xlane.xlu0 %1317
    %v1319 = vsub.f32 %v1312, %v1318
    %v1320 = vmul.f32 %v1319, 1.442695
    %v1321 = vpow.pop %v1320
    %v1322 = vsel %vm1315, %v1321, 0.0
    %1323 = vadd.xlane.f32.xlu0 %v1322
    %v1324 = vpop.xlane.xlu0 %1323
    %v1325 = vlog2.pop %v1324
    %v1326 = vmul.f32 %v1325, 0.6931472
    %v1327 = vsub.f32 %v1319, %v1326
    %1328 = vst.msk [vmem:[%s8] sm:$0xff] %vm1315, %v1327
  $region41: #{lstm_forward.1} parent=0 // pred_fallthru
    _
  // Predicated region
  $region42: #{lstm_forward.1} parent=0 // pred_check
    _
  $region43: #{lstm_forward.1} parent=0 // pred_check_branch
    %1330 = sbr.rel (0) target = $region45
  $region44: #{lstm_forward.1} parent=0 // pred_region
    _
  $region45: #{lstm_forward.1} parent=0 // pred_fallthru
    _
  // Predicated region
  $region46: #{lstm_forward.1} parent=0 // pred_check
    _
  $region47: #{lstm_forward.1} parent=0 // pred_check_branch
    %1332 = sbr.rel (0) target = $region49
  $region48: #{lstm_forward.1} parent=0 // pred_region
    _
  $region49: #{lstm_forward.1} parent=0 // pred_fallthru
    _
  // Predicated region
  $region50: #{lstm_forward.1} parent=0 // pred_check
    _
  $region51: #{lstm_forward.1} parent=0 // pred_check_branch
    %1334 = sbr.rel (0) target = $region53
  $region52: #{lstm_forward.1} parent=0 // pred_region
    _
  $region53: #{lstm_forward.1} parent=0 // pred_fallthru
    _
  // Predicated region
  $region54: #{lstm_forward.1} parent=0 // pred_check
    _
  $region55: #{lstm_forward.1} parent=0 // pred_check_branch
    %1336 = sbr.rel (0) target = $region57
  $region56: #{lstm_forward.1} parent=0 // pred_region
    _
  $region57: #{lstm_forward.1} parent=0 // pred_fallthru
    _
  // Predicated region
  $region58: #{lstm_forward.1} parent=0 // pred_check
    _
  $region59: #{lstm_forward.1} parent=0 // pred_check_branch
    %1338 = sbr.rel (0) target = $region61
  $region60: #{lstm_forward.1} parent=0 // pred_region
    _
  $region61: #{lstm_forward.1} parent=0 // pred_fallthru
    _
  // Predicated region
  $region62: #{lstm_forward.1} parent=0 // pred_check
    _
  $region63: #{lstm_forward.1} parent=0 // pred_check_branch
    %1340 = sbr.rel (0) target = $region65
  $region64: #{lstm_forward.1} parent=0 // pred_region
    _
  $region65: #{lstm_forward.1} parent=0 // pred_fallthru
    _

</llo_original>
